<compile_context>
chip_gen: v6e
topology: v6e:2x2x1
jax: 0.10.0
libtpu: 0.0.40
codegen_flags: <defaults>
</compile_context>

<pallas_src>
import numpy as np
import jax
import jax.numpy as jnp
from jax.experimental import pallas as pl
from jax.experimental.pallas import tpu as pltpu

NEG_SLOPE = 0.2    # GATv2Conv default negative_slope
BN_EPS = 1e-5      # BatchNorm1d default eps
FP = 128           # lane-width padding target for all feature dims
W3_COL = 64        # column offset of fc3 (w3) inside the shared fc2/fc3 panel


def _batchnorm(x, axis):
    """Training-mode BatchNorm1d over `axis` (gamma=1, beta=0, biased var)."""
    mean = jnp.mean(x, axis=axis, keepdims=True)
    var = jnp.mean((x - mean) ** 2, axis=axis, keepdims=True)
    return (x - mean) * jax.lax.rsqrt(var + BN_EPS)


def make_actor_kernel(offsets, bg, n):
    """Kernel over one fat block of `bg` graphs with `n` nodes each."""
    r_vec, r_w1, r_w23 = offsets["vec"], offsets["w1"], offsets["w23"]

    def actor_kernel(x_ref, bias_ref, p_ref, out_ref):
        # --- parameters: one resident bf16 slab, static 16-row-aligned slices ---
        wl = p_ref[0:FP, :]                                    # (128,128) bf16
        vec = p_ref[r_vec:r_vec + 16, :].astype(jnp.float32)   # rows 0=bl 1=att 2=gb
        bl, att, gb = vec[0:1, :], vec[1:2, :], vec[2:3, :]
        w1 = p_ref[r_w1:r_w1 + FP, :]                          # (128,128) bf16
        w23 = p_ref[r_w23:r_w23 + FP, :]                       # shared fc2/fc3 panel

        bias = bias_ref[...]                                   # (bg,n,n) f32, 0 / -1e30

        # --- GATv2 lin_l (share_weights=True): h = x @ Wl^T + bl, M = bg*n rows ---
        x2 = x_ref[...].reshape(bg * n, FP).astype(jnp.bfloat16)
        h2 = jnp.dot(x2, wl, preferred_element_type=jnp.float32) + bl
        h = h2.reshape(bg, n, FP)                              # f32, cols >= f1 are zero

        # --- attention: e[b,i,j] = att . leaky_relu(h_i + h_j) + adjacency bias ---
        s = h[:, :, None, :] + h[:, None, :, :]                # (bg,n,n,128) f32
        s = jnp.where(s > 0, s, NEG_SLOPE * s)
        e = jnp.sum(s * att[None, None, :, :], axis=-1) + bias # (bg,n,n)
        # TODO(synk): at large N, replace this XLU reduce with an MXU dot against
        # an (FP,128) panel holding att in column 0 and add a row-block grid axis.

        # masked softmax over source nodes j; self-loops guarantee >=1 edge per row
        e = e - jnp.max(e, axis=-1, keepdims=True)
        pexp = jnp.exp(e)
        denom = jnp.sum(pexp, axis=-1, keepdims=True)
        alpha = pexp * pl.reciprocal(denom, approx=True)       # EUP slot

        # aggregation kept in f32 (softmax weights lose too much precision in bf16)
        gat = jnp.einsum("bij,bjf->bif", alpha, h,
                         preferred_element_type=jnp.float32) + gb

        # --- MLP head: relu(fc_k(bn_k(.))) x3, then sigmoid.  BN per graph (axis=1). ---
        def dense(z3, w):
            z2 = _batchnorm(z3, axis=1).reshape(bg * n, FP).astype(jnp.bfloat16)
            y = jnp.dot(z2, w, preferred_element_type=jnp.float32)
            return jnp.maximum(y, 0.0).reshape(bg, n, FP)

        y = dense(gat, w1)    # fc1 output in cols [0:f1)
        y = dense(y, w23)     # fc2 output in cols [0:f2)
        y = dense(y, w23)     # fc3 output in cols [W3_COL:W3_COL+act)
        out_ref[...] = jax.nn.sigmoid(y)                       # lane-dense 128-wide store

    return actor_kernel


def _num_grid_blocks(batch):
    """2 fat parallel blocks on v7x (one per TensorCore), 1 elsewhere (single TC)."""
    try:
        kind = jax.devices()[0].device_kind.lower()
    except Exception:
        return 1
    if batch % 2 == 0 and ("v7" in kind or "tpu7" in kind):
        return 2
    return 1


def actor_forward(x, bias, packed, offsets, act):
    """x: (B,N,OBS) f32, bias: (B,N,N) f32 additive mask, packed: (400,128) bf16
    -> (B,N,act) f32."""
    b, n, obs = x.shape
    nb = _num_grid_blocks(b)
    bg = b // nb
    # lane-dense, (8,128)-aligned input block: pad the feature axis to 128
    x_pad = jnp.zeros((b, n, FP), x.dtype).at[..., :obs].set(x)

    out_pad = pl.pallas_call(
        make_actor_kernel(offsets, bg, n),
        out_shape=jax.ShapeDtypeStruct((b, n, FP), jnp.float32),
        grid=(nb,),
        in_specs=[
            pl.BlockSpec((bg, n, FP), lambda i: (i, 0, 0)),
            pl.BlockSpec((bg, n, n), lambda i: (i, 0, 0)),
            pl.BlockSpec(packed.shape, lambda i: (0, 0)),   # resident across the grid
        ],
        out_specs=pl.BlockSpec((bg, n, FP), lambda i: (i, 0, 0)),
        compiler_params=pltpu.CompilerParams(
            dimension_semantics=("parallel",)),
    )(x_pad, bias, packed)
    # the real action columns live at the shared-panel offset; drop the padding
    return out_pad[:, :, W3_COL:W3_COL + act]


def make_params(key, obs_size, act_size):
    f1 = int(np.floor((obs_size + act_size) / 2))   # fc1_units
    f2 = int(np.floor(f1 / 2))                      # fc2_units
    ks = jax.random.split(key, 5)

    def uni(k, shape, lim):
        return jax.random.uniform(k, shape, jnp.float32, -lim, lim)

    glim = float(np.sqrt(6.0 / (obs_size + f1)))    # GATv2 lin_l glorot-ish
    params = {
        "wl":  uni(ks[0], (obs_size, f1), glim),    # stored transposed: (OBS, F1)
        "bl":  jnp.zeros((1, f1), jnp.float32),
        "att": uni(ks[1], (1, f1), glim),
        "gb":  jnp.zeros((1, f1), jnp.float32),
        # fc weights, uniform(-1/sqrt(fan_out)) per hidden_init, stored (in, out)
        "w1":  uni(ks[2], (f1, f1), 1.0 / np.sqrt(f1)),
        "w2":  uni(ks[3], (f1, f2), 1.0 / np.sqrt(f2)),
        "w3":  uni(ks[4], (f2, act_size), 1.0 / np.sqrt(act_size)),
    }
    return params, f1, f2


def pack_params(params, obs, f1, f2, act):
    """Pack all parameters into one bf16, 128-lane slab (single resident DMA).

    Row layout (every offset a multiple of 16 = bf16 sublane tile, no relayouts):
      [  0:128)  wl    (real rows [0:obs), cols [0:f1))
      [128:144)  vec   (row 0 = bl, 1 = att, 2 = gb; cols [0:f1))
      [144:272)  w1    (real rows [0:f1),  cols [0:f1))
      [272:400)  w2/w3 shared panel:
                   w2 at rows [0:f1), cols [0:f2)
                   w3 at rows [0:f2), cols [W3_COL:W3_COL+act)
    Sharing the fc2/fc3 panel is exact: fc3's output columns are fed only by the
    real fc2-output activation columns [0:f2), and the extra values the fc2
    matmul leaves in cols [W3_COL:..) only ever multiply all-zero weight rows.
    """
    r_vec = FP
    r_w1 = r_vec + 16
    r_w23 = r_w1 + FP
    total = r_w23 + FP                              # 400 rows

    packed = jnp.zeros((total, FP), jnp.float32)
    packed = packed.at[0:obs, 0:f1].set(params["wl"])
    packed = packed.at[r_vec + 0, 0:f1].set(params["bl"][0])
    packed = packed.at[r_vec + 1, 0:f1].set(params["att"][0])
    packed = packed.at[r_vec + 2, 0:f1].set(params["gb"][0])
    packed = packed.at[r_w1:r_w1 + f1, 0:f1].set(params["w1"])
    packed = packed.at[r_w23:r_w23 + f1, 0:f2].set(params["w2"])
    packed = packed.at[r_w23:r_w23 + f2, W3_COL:W3_COL + act].set(params["w3"])
    offsets = {"vec": r_vec, "w1": r_w1, "w23": r_w23}
    return packed.astype(jnp.bfloat16), offsets


def build_adjacency_bias(edge_index, n):
    """edge_index: (2,E), row 0 = src, row 1 = dst.  Additive softmax bias:
    0 where an edge dst<-src exists (self-loops included), -1e30 elsewhere."""
    src, dst = edge_index
    adj = jnp.zeros((n, n), jnp.float32).at[dst, src].add(1.0)
    adj = adj + jnp.eye(n, dtype=jnp.float32)
    return jnp.where(adj > 0, 0.0, -1e30).astype(jnp.float32)


def actor_reference(x, bias, params):
    """Pure-JAX reference for one graph (f32 math, exact softmax division)."""
    h = x @ params["wl"] + params["bl"]
    s = h[:, None, :] + h[None, :, :]
    s = jnp.where(s > 0, s, NEG_SLOPE * s)
    e = jnp.sum(s * params["att"][None, :, :], axis=-1) + bias
    e = e - jnp.max(e, axis=1, keepdims=True)
    p = jnp.exp(e)
    alpha = p / jnp.sum(p, axis=1, keepdims=True)
    gat = alpha @ h + params["gb"]
    y = jnp.maximum(_batchnorm(gat, 0) @ params["w1"], 0.0)
    y = jnp.maximum(_batchnorm(y, 0) @ params["w2"], 0.0)
    y = jnp.maximum(_batchnorm(y, 0) @ params["w3"], 0.0)
    return jax.nn.sigmoid(y)


if __name__ == "__main__":
    OBS, ACT, N, B = 16, 8, 8, 4   # observation_size=16, action_size=8 -> fc1=12, fc2=6

    key = jax.random.PRNGKey(0)
    kx, kp = jax.random.split(key)

    params, f1, f2 = make_params(kp, OBS, ACT)
    packed, offsets = pack_params(params, OBS, f1, f2, ACT)

    # deterministic node features for a batch of B graphs
    x = jax.random.normal(kx, (B, N, OBS), jnp.float32)

    # small bidirectional ring graph, shared across the batch
    src = jnp.arange(N, dtype=jnp.int32)
    dst = (src + 1) % N
    edge_index = jnp.stack([jnp.concatenate([src, dst]),
                            jnp.concatenate([dst, src])], axis=0)   # (2, 2N)
    bias1 = build_adjacency_bias(edge_index, N)                     # (N, N) f32
    bias = jnp.broadcast_to(bias1, (B, N, N)).astype(jnp.float32)

    out = actor_forward(x, bias, packed, offsets, ACT)
    out = jax.block_until_ready(out)

    assert out.shape == (B, N, ACT)
    assert bool(jnp.all(jnp.isfinite(out)))

    # The kernel consumes bf16-stored weights (per the perf review); the reference
    # uses the same bf16-rounded parameters so the check isolates kernel math
    # (activation casts, approx reciprocal, accumulation order).
    params_dq = {k: v.astype(jnp.bfloat16).astype(jnp.float32)
                 for k, v in params.items()}
    ref = jax.vmap(lambda xb: actor_reference(xb, bias1, params_dq))(x)
    assert bool(jnp.allclose(out, ref, atol=2e-2, rtol=2e-2))

    print("KERNEL_OK")
</pallas_src>

<mosaic_0001>
module attributes {stable_mosaic.version = 11 : i64} {
  func.func @actor_kernel(%arg0: i32, %arg1: memref<4x8x128xf32, #tpu.memory_space<vmem>>, %arg2: memref<4x8x8xf32, #tpu.memory_space<vmem>>, %arg3: memref<400x128xbf16, #tpu.memory_space<vmem>>, %arg4: memref<4x8x128xf32, #tpu.memory_space<vmem>>) attributes {dimension_semantics = [#tpu.dimension_semantics<parallel>], iteration_bounds = array<i64: 1>, scalar_prefetch = 0 : i64, scratch_operands = 0 : i64, tpu.core_type = #tpu.core_type<tc>, window_params = [{transform_indices = @transform_0, window_bounds = array<i64: 4, 8, 128>}, {transform_indices = @transform_1, window_bounds = array<i64: 4, 8, 8>}, {pipeline_mode = #tpu.pipeline_mode<synchronous>, transform_indices = @transform_2, window_bounds = array<i64: 400, 128>}, {transform_indices = @transform_3, window_bounds = array<i64: 4, 8, 128>}]} {
    %c0 = arith.constant 0 : index
    %c0_0 = arith.constant 0 : index
    %0 = vector.load %arg3[%c0, %c0_0] : memref<400x128xbf16, #tpu.memory_space<vmem>>, vector<128x128xbf16>
    %c128 = arith.constant 128 : index
    %c0_1 = arith.constant 0 : index
    %1 = vector.load %arg3[%c128, %c0_1] : memref<400x128xbf16, #tpu.memory_space<vmem>>, vector<16x128xbf16>
    %2 = arith.extf %1 : vector<16x128xbf16> to vector<16x128xf32>
    %3 = vector.extract_strided_slice %2 {offsets = [0, 0], sizes = [1, 128], strides = [1, 1]} : vector<16x128xf32> to vector<1x128xf32>
    %4 = vector.extract_strided_slice %2 {offsets = [1, 0], sizes = [1, 128], strides = [1, 1]} : vector<16x128xf32> to vector<1x128xf32>
    %5 = vector.extract_strided_slice %2 {offsets = [2, 0], sizes = [1, 128], strides = [1, 1]} : vector<16x128xf32> to vector<1x128xf32>
    %c144 = arith.constant 144 : index
    %c0_2 = arith.constant 0 : index
    %6 = vector.load %arg3[%c144, %c0_2] : memref<400x128xbf16, #tpu.memory_space<vmem>>, vector<128x128xbf16>
    %c272 = arith.constant 272 : index
    %c0_3 = arith.constant 0 : index
    %7 = vector.load %arg3[%c272, %c0_3] : memref<400x128xbf16, #tpu.memory_space<vmem>>, vector<128x128xbf16>
    %c0_4 = arith.constant 0 : index
    %c0_5 = arith.constant 0 : index
    %c0_6 = arith.constant 0 : index
    %8 = vector.load %arg2[%c0_4, %c0_5, %c0_6] : memref<4x8x8xf32, #tpu.memory_space<vmem>>, vector<4x8x8xf32>
    %c0_7 = arith.constant 0 : index
    %c0_8 = arith.constant 0 : index
    %c0_9 = arith.constant 0 : index
    %9 = vector.load %arg1[%c0_7, %c0_8, %c0_9] : memref<4x8x128xf32, #tpu.memory_space<vmem>>, vector<4x8x128xf32>
    %10 = vector.shape_cast %9 : vector<4x8x128xf32> to vector<32x128xf32>
    %11 = arith.truncf %10 : vector<32x128xf32> to vector<32x128xbf16>
    %cst = arith.constant dense<0.000000e+00> : vector<32x128xf32>
    %12 = tpu.matmul %11, %0, %cst {dimension_numbers = #tpu.dot_dimension_numbers<[1], [0], [0], [1], [0, 0, 1, 1], [], []>} : vector<32x128xbf16>, vector<128x128xbf16>, vector<32x128xf32> -> vector<32x128xf32>
    %13 = vector.broadcast %3 : vector<1x128xf32> to vector<32x128xf32>
    %14 = arith.addf %12, %13 : vector<32x128xf32>
    %15 = vector.shape_cast %14 : vector<32x128xf32> to vector<4x8x128xf32>
    %16 = vector.shape_cast %15 : vector<4x8x128xf32> to vector<4x8x1x128xf32>
    %17 = vector.shape_cast %15 : vector<4x8x128xf32> to vector<4x1x8x128xf32>
    %18 = vector.broadcast %16 : vector<4x8x1x128xf32> to vector<4x8x8x128xf32>
    %19 = vector.broadcast %17 : vector<4x1x8x128xf32> to vector<4x8x8x128xf32>
    %20 = arith.addf %18, %19 : vector<4x8x8x128xf32>
    %cst_10 = arith.constant 0.000000e+00 : f32
    %21 = vector.broadcast %cst_10 : f32 to vector<4x8x8x128xf32>
    %22 = arith.cmpf ogt, %20, %21 : vector<4x8x8x128xf32>
    %cst_11 = arith.constant 2.000000e-01 : f32
    %23 = vector.broadcast %cst_11 : f32 to vector<4x8x8x128xf32>
    %24 = arith.mulf %23, %20 : vector<4x8x8x128xf32>
    %25 = arith.select %22, %20, %24 : vector<4x8x8x128xi1>, vector<4x8x8x128xf32>
    %26 = vector.shape_cast %4 : vector<1x128xf32> to vector<1x1x1x128xf32>
    %27 = vector.broadcast %26 : vector<1x1x1x128xf32> to vector<4x8x8x128xf32>
    %28 = arith.mulf %25, %27 : vector<4x8x8x128xf32>
    %cst_12 = arith.constant dense<0.000000e+00> : vector<4x8x8xf32>
    %29 = vector.multi_reduction <add>, %28, %cst_12 [3] : vector<4x8x8x128xf32> to vector<4x8x8xf32>
    %30 = arith.addf %29, %8 : vector<4x8x8xf32>
    %cst_13 = arith.constant dense<0xFF800000> : vector<4x8xf32>
    %31 = vector.multi_reduction <maximumf>, %30, %cst_13 [2] : vector<4x8x8xf32> to vector<4x8xf32>
    %32 = vector.shape_cast %31 : vector<4x8xf32> to vector<4x8x1xf32>
    %33 = vector.broadcast %32 : vector<4x8x1xf32> to vector<4x8x8xf32>
    %34 = arith.subf %30, %33 : vector<4x8x8xf32>
    %35 = math.exp %34 : vector<4x8x8xf32>
    %cst_14 = arith.constant dense<0.000000e+00> : vector<4x8xf32>
    %36 = vector.multi_reduction <add>, %35, %cst_14 [2] : vector<4x8x8xf32> to vector<4x8xf32>
    %37 = vector.shape_cast %36 : vector<4x8xf32> to vector<4x8x1xf32>
    %38 = tpu.reciprocal %37 {approx = true} : vector<4x8x1xf32> -> vector<4x8x1xf32>
    %39 = vector.broadcast %38 : vector<4x8x1xf32> to vector<4x8x8xf32>
    %40 = arith.mulf %35, %39 : vector<4x8x8xf32>
    "tpu.trace_start"() <{level = 10 : i32, message = "bij,bjf->bif"}> : () -> ()
    %cst_15 = arith.constant dense<0.000000e+00> : vector<4x8x128xf32>
    %41 = tpu.matmul %40, %15, %cst_15 {dimension_numbers = #tpu.dot_dimension_numbers<[2], [1], [1], [2], [0, 0, 0, 1, 1, 2], [0], [0]>} : vector<4x8x8xf32>, vector<4x8x128xf32>, vector<4x8x128xf32> -> vector<4x8x128xf32>
    "tpu.trace_stop"() : () -> ()
    %42 = vector.shape_cast %5 : vector<1x128xf32> to vector<1x1x128xf32>
    %43 = vector.broadcast %42 : vector<1x1x128xf32> to vector<4x8x128xf32>
    %44 = arith.addf %41, %43 : vector<4x8x128xf32>
    %cst_16 = arith.constant dense<0.000000e+00> : vector<4x128xf32>
    %45 = vector.multi_reduction <add>, %44, %cst_16 [1] : vector<4x8x128xf32> to vector<4x128xf32>
    %46 = vector.shape_cast %45 : vector<4x128xf32> to vector<4x1x128xf32>
    %cst_17 = arith.constant 8.000000e+00 : f32
    %47 = vector.broadcast %cst_17 : f32 to vector<4x1x128xf32>
    %48 = arith.divf %46, %47 : vector<4x1x128xf32>
    %49 = vector.broadcast %48 : vector<4x1x128xf32> to vector<4x8x128xf32>
    %50 = arith.subf %44, %49 : vector<4x8x128xf32>
    %51 = arith.mulf %50, %50 : vector<4x8x128xf32>
    %cst_18 = arith.constant dense<0.000000e+00> : vector<4x128xf32>
    %52 = vector.multi_reduction <add>, %51, %cst_18 [1] : vector<4x8x128xf32> to vector<4x128xf32>
    %53 = vector.shape_cast %52 : vector<4x128xf32> to vector<4x1x128xf32>
    %cst_19 = arith.constant 8.000000e+00 : f32
    %54 = vector.broadcast %cst_19 : f32 to vector<4x1x128xf32>
    %55 = arith.divf %53, %54 : vector<4x1x128xf32>
    %56 = vector.broadcast %48 : vector<4x1x128xf32> to vector<4x8x128xf32>
    %57 = arith.subf %44, %56 : vector<4x8x128xf32>
    %cst_20 = arith.constant 9.99999974E-6 : f32
    %58 = vector.broadcast %cst_20 : f32 to vector<4x1x128xf32>
    %59 = arith.addf %55, %58 : vector<4x1x128xf32>
    %60 = math.rsqrt %59 : vector<4x1x128xf32>
    %61 = vector.broadcast %60 : vector<4x1x128xf32> to vector<4x8x128xf32>
    %62 = arith.mulf %57, %61 : vector<4x8x128xf32>
    %63 = vector.shape_cast %62 : vector<4x8x128xf32> to vector<32x128xf32>
    %64 = arith.truncf %63 : vector<32x128xf32> to vector<32x128xbf16>
    %cst_21 = arith.constant dense<0.000000e+00> : vector<32x128xf32>
    %65 = tpu.matmul %64, %6, %cst_21 {dimension_numbers = #tpu.dot_dimension_numbers<[1], [0], [0], [1], [0, 0, 1, 1], [], []>} : vector<32x128xbf16>, vector<128x128xbf16>, vector<32x128xf32> -> vector<32x128xf32>
    %cst_22 = arith.constant 0.000000e+00 : f32
    %66 = vector.broadcast %cst_22 : f32 to vector<32x128xf32>
    %67 = arith.maximumf %65, %66 : vector<32x128xf32>
    %68 = vector.shape_cast %67 : vector<32x128xf32> to vector<4x8x128xf32>
    %cst_23 = arith.constant dense<0.000000e+00> : vector<4x128xf32>
    %69 = vector.multi_reduction <add>, %68, %cst_23 [1] : vector<4x8x128xf32> to vector<4x128xf32>
    %70 = vector.shape_cast %69 : vector<4x128xf32> to vector<4x1x128xf32>
    %cst_24 = arith.constant 8.000000e+00 : f32
    %71 = vector.broadcast %cst_24 : f32 to vector<4x1x128xf32>
    %72 = arith.divf %70, %71 : vector<4x1x128xf32>
    %73 = vector.broadcast %72 : vector<4x1x128xf32> to vector<4x8x128xf32>
    %74 = arith.subf %68, %73 : vector<4x8x128xf32>
    %75 = arith.mulf %74, %74 : vector<4x8x128xf32>
    %cst_25 = arith.constant dense<0.000000e+00> : vector<4x128xf32>
    %76 = vector.multi_reduction <add>, %75, %cst_25 [1] : vector<4x8x128xf32> to vector<4x128xf32>
    %77 = vector.shape_cast %76 : vector<4x128xf32> to vector<4x1x128xf32>
    %cst_26 = arith.constant 8.000000e+00 : f32
    %78 = vector.broadcast %cst_26 : f32 to vector<4x1x128xf32>
    %79 = arith.divf %77, %78 : vector<4x1x128xf32>
    %80 = vector.broadcast %72 : vector<4x1x128xf32> to vector<4x8x128xf32>
    %81 = arith.subf %68, %80 : vector<4x8x128xf32>
    %cst_27 = arith.constant 9.99999974E-6 : f32
    %82 = vector.broadcast %cst_27 : f32 to vector<4x1x128xf32>
    %83 = arith.addf %79, %82 : vector<4x1x128xf32>
    %84 = math.rsqrt %83 : vector<4x1x128xf32>
    %85 = vector.broadcast %84 : vector<4x1x128xf32> to vector<4x8x128xf32>
    %86 = arith.mulf %81, %85 : vector<4x8x128xf32>
    %87 = vector.shape_cast %86 : vector<4x8x128xf32> to vector<32x128xf32>
    %88 = arith.truncf %87 : vector<32x128xf32> to vector<32x128xbf16>
    %cst_28 = arith.constant dense<0.000000e+00> : vector<32x128xf32>
    %89 = tpu.matmul %88, %7, %cst_28 {dimension_numbers = #tpu.dot_dimension_numbers<[1], [0], [0], [1], [0, 0, 1, 1], [], []>} : vector<32x128xbf16>, vector<128x128xbf16>, vector<32x128xf32> -> vector<32x128xf32>
    %cst_29 = arith.constant 0.000000e+00 : f32
    %90 = vector.broadcast %cst_29 : f32 to vector<32x128xf32>
    %91 = arith.maximumf %89, %90 : vector<32x128xf32>
    %92 = vector.shape_cast %91 : vector<32x128xf32> to vector<4x8x128xf32>
    %cst_30 = arith.constant dense<0.000000e+00> : vector<4x128xf32>
    %93 = vector.multi_reduction <add>, %92, %cst_30 [1] : vector<4x8x128xf32> to vector<4x128xf32>
    %94 = vector.shape_cast %93 : vector<4x128xf32> to vector<4x1x128xf32>
    %cst_31 = arith.constant 8.000000e+00 : f32
    %95 = vector.broadcast %cst_31 : f32 to vector<4x1x128xf32>
    %96 = arith.divf %94, %95 : vector<4x1x128xf32>
    %97 = vector.broadcast %96 : vector<4x1x128xf32> to vector<4x8x128xf32>
    %98 = arith.subf %92, %97 : vector<4x8x128xf32>
    %99 = arith.mulf %98, %98 : vector<4x8x128xf32>
    %cst_32 = arith.constant dense<0.000000e+00> : vector<4x128xf32>
    %100 = vector.multi_reduction <add>, %99, %cst_32 [1] : vector<4x8x128xf32> to vector<4x128xf32>
    %101 = vector.shape_cast %100 : vector<4x128xf32> to vector<4x1x128xf32>
    %cst_33 = arith.constant 8.000000e+00 : f32
    %102 = vector.broadcast %cst_33 : f32 to vector<4x1x128xf32>
    %103 = arith.divf %101, %102 : vector<4x1x128xf32>
    %104 = vector.broadcast %96 : vector<4x1x128xf32> to vector<4x8x128xf32>
    %105 = arith.subf %92, %104 : vector<4x8x128xf32>
    %cst_34 = arith.constant 9.99999974E-6 : f32
    %106 = vector.broadcast %cst_34 : f32 to vector<4x1x128xf32>
    %107 = arith.addf %103, %106 : vector<4x1x128xf32>
    %108 = math.rsqrt %107 : vector<4x1x128xf32>
    %109 = vector.broadcast %108 : vector<4x1x128xf32> to vector<4x8x128xf32>
    %110 = arith.mulf %105, %109 : vector<4x8x128xf32>
    %111 = vector.shape_cast %110 : vector<4x8x128xf32> to vector<32x128xf32>
    %112 = arith.truncf %111 : vector<32x128xf32> to vector<32x128xbf16>
    %cst_35 = arith.constant dense<0.000000e+00> : vector<32x128xf32>
    %113 = tpu.matmul %112, %7, %cst_35 {dimension_numbers = #tpu.dot_dimension_numbers<[1], [0], [0], [1], [0, 0, 1, 1], [], []>} : vector<32x128xbf16>, vector<128x128xbf16>, vector<32x128xf32> -> vector<32x128xf32>
    %cst_36 = arith.constant 0.000000e+00 : f32
    %114 = vector.broadcast %cst_36 : f32 to vector<32x128xf32>
    %115 = arith.maximumf %113, %114 : vector<32x128xf32>
    %116 = vector.shape_cast %115 : vector<32x128xf32> to vector<4x8x128xf32>
    %117 = arith.negf %116 : vector<4x8x128xf32>
    %118 = math.exp %117 : vector<4x8x128xf32>
    %cst_37 = arith.constant 1.000000e+00 : f32
    %119 = vector.broadcast %cst_37 : f32 to vector<4x8x128xf32>
    %120 = arith.addf %119, %118 : vector<4x8x128xf32>
    %121 = arith.divf %119, %120 : vector<4x8x128xf32>
    %c0_38 = arith.constant 0 : index
    %c0_39 = arith.constant 0 : index
    %c0_40 = arith.constant 0 : index
    %122 = vector.load %arg4[%c0_38, %c0_39, %c0_40] : memref<4x8x128xf32, #tpu.memory_space<vmem>>, vector<4x8x128xf32>
    tpu.vector_store %arg4[%c0_38, %c0_39, %c0_40], %121 {strides = array<i32>} : memref<4x8x128xf32, #tpu.memory_space<vmem>>, vector<4x8x128xf32>,
    return
  }
  func.func @transform_0(%arg0: i32) -> (i32, i32, i32) {
    %c0_i32 = arith.constant 0 : i32
    %c0_i32_0 = arith.constant 0 : i32
    %c0_i32_1 = arith.constant 0 : i32
    return %arg0, %c0_i32, %c0_i32_0 : i32, i32, i32
  }
  func.func @transform_1(%arg0: i32) -> (i32, i32, i32) {
    %c0_i32 = arith.constant 0 : i32
    %c0_i32_0 = arith.constant 0 : i32
    %c0_i32_1 = arith.constant 0 : i32
    return %arg0, %c0_i32, %c0_i32_0 : i32, i32, i32
  }
  func.func @transform_2(%arg0: i32) -> (i32, i32) {
    %c0_i32 = arith.constant 0 : i32
    %c0_i32_0 = arith.constant 0 : i32
    %c0_i32_1 = arith.constant 0 : i32
    return %c0_i32, %c0_i32_0 : i32, i32
  }
  func.func @transform_3(%arg0: i32) -> (i32, i32, i32) {
    %c0_i32 = arith.constant 0 : i32
    %c0_i32_0 = arith.constant 0 : i32
    %c0_i32_1 = arith.constant 0 : i32
    return %arg0, %c0_i32, %c0_i32_0 : i32, i32, i32
  }
}

</mosaic_0001>

<llo_original>
// kernel: tpu_custom_call.1
$region0: #{tpu_custom_call.1}
  #allocation0 [shape = 'u32[]', space=smem, size = 0x4, offset = 0x4, fixed_abs, tag = 'smem constant byte address 0x4 - core index']
  #allocation1 [shape = 'u32[144,128]{1,0:T(1,128)}', space=vmem, size = 0x12000, scoped, tag = 'internal scratch']
  %s0 = inlined_call_operand.hbm [shape: f32[4,8,128], index: 0, kind: input, shape index: {}]
  %s1 = inlined_call_operand.hbm [shape: f32[4,8,8], index: 1, kind: input, shape index: {}]
  %s2 = inlined_call_operand.hbm [shape: bf16[400,128], index: 2, kind: input, shape index: {}]
  %s3 = inlined_call_operand.hbm [shape: f32[4,8,128], index: 3, kind: output, shape index: {}]
  %s4 = sld [smem:[#allocation0]]
  $region34: #{tpu_custom_call.1} parent=0
    _
  %s6 = ssub.s32 1, %s4
  %s7 = scalar_select 0, %s6, %s4
  $region1: #{tpu_custom_call.1} parent=0
    #allocation2 [shape = 'u8[16384]{0}', space=vmem, size = 0x4000, scoped, tag = 'input window, operand 0, single buffered']
    #allocation3 [shape = 's32[1]{0}', space=sflag, size = 0x4, scoped, tag = 'scoped memory for tpu_custom_call.1']
    #allocation4 [shape = 's32[1]{0}', space=sflag, size = 0x4, scoped, tag = 'scoped memory for tpu_custom_call.1']
    #allocation5 [shape = 'u8[16384]{0}', space=vmem, size = 0x4000, scoped, tag = 'input window, operand 1, single buffered']
    #allocation6 [shape = 's32[1]{0}', space=sflag, size = 0x4, scoped, tag = 'scoped memory for tpu_custom_call.1']
    #allocation7 [shape = 'u8[102400]{0}', space=vmem, size = 0x19000, scoped, tag = 'input window, operand 2, single buffered']
    #allocation8 [shape = 'u8[16384]{0}', space=vmem, size = 0x4000, scoped, tag = 'output window, operand 0, single buffered']
    %8 = vsyncpa [#allocation3], 0
    %9 = vsyncpa [#allocation6], 0
    %10 = vsyncpa [#allocation4], 0
    // Predicated region
    $region2: #{tpu_custom_call.1} parent=1 // pred_check
      _
    $region3: #{tpu_custom_call.1} parent=1 // pred_check_branch
      %12 = sbr.rel (0) target = $region5
    $region4: #{tpu_custom_call.1} parent=1 // pred_region
      %s14 = ssub.s32 512, 512
      %15 = vsyncadd [#allocation3], %s14
      %s16 = sshll.u32 [#allocation2], 4
      %s17 = int_to_ptr.vmem [resolvable:$true] %s16
      %22 = dma.hbm_to_vmem [thread:$0]  %s0, 512, %s17, [#allocation3], 128, 128, 8
    $region5: #{tpu_custom_call.1} parent=1 // pred_fallthru
      _
    // Predicated region
    $region6: #{tpu_custom_call.1} parent=1 // pred_check
      _
    $region7: #{tpu_custom_call.1} parent=1 // pred_check_branch
      %24 = sbr.rel (0) target = $region9
    $region8: #{tpu_custom_call.1} parent=1 // pred_region
      %s26 = ssub.s32 512, 512
      %27 = vsyncadd [#allocation6], %s26
      %s28 = sshll.u32 [#allocation5], 4
      %s29 = int_to_ptr.vmem [resolvable:$true] %s28
      %34 = dma.hbm_to_vmem [thread:$0]  %s1, 512, %s29, [#allocation6], 128, 128, 8
    $region9: #{tpu_custom_call.1} parent=1 // pred_fallthru
      _
    // Predicated region
    $region10: #{tpu_custom_call.1} parent=1 // pred_check
      _
    $region11: #{tpu_custom_call.1} parent=1 // pred_check_branch
      %36 = sbr.rel (0) target = $region13
    $region12: #{tpu_custom_call.1} parent=1 // pred_region
      %s38 = ssub.s32 3200, 3200
      %39 = vsyncadd [#allocation6], %s38
      %s40 = sshll.u32 [#allocation7], 4
      %s41 = int_to_ptr.vmem [resolvable:$true] %s40
      %46 = dma.hbm_to_vmem [thread:$0]  %s2, 3200, %s41, [#allocation6], 64, 64, 4
    $region13: #{tpu_custom_call.1} parent=1 // pred_fallthru
      _
    // Predicated region
    $region14: #{tpu_custom_call.1} parent=1 // pred_check
      _
    $region15: #{tpu_custom_call.1} parent=1 // pred_check_branch
      %48 = sbr.rel (0) target = $region17
    $region16: #{tpu_custom_call.1} parent=1 // pred_region
      %49 = dma.done [#allocation3], 512
    $region17: #{tpu_custom_call.1} parent=1 // pred_fallthru
      _
    // Predicated region
    $region18: #{tpu_custom_call.1} parent=1 // pred_check
      _
    $region19: #{tpu_custom_call.1} parent=1 // pred_check_branch
      %51 = sbr.rel (0) target = $region21
    $region20: #{tpu_custom_call.1} parent=1 // pred_region
      %52 = dma.done [#allocation6], 512
    $region21: #{tpu_custom_call.1} parent=1 // pred_fallthru
      _
    // Predicated region
    $region22: #{tpu_custom_call.1} parent=1 // pred_check
      _
    $region23: #{tpu_custom_call.1} parent=1 // pred_check_branch
      %54 = sbr.rel (0) target = $region25
    $region24: #{tpu_custom_call.1} parent=1 // pred_region
      %55 = dma.done [#allocation6], 3200
    $region25: #{tpu_custom_call.1} parent=1 // pred_fallthru
      _
    %v57 = vld [vmem:[#allocation7] sm:$0xf]
    %v58 = vld [vmem:[#allocation7 + $0x4] sm:$0xf]
    %v59 = vld [vmem:[#allocation7 + $0x8] sm:$0xf]
    %v60 = vld [vmem:[#allocation7 + $0xc] sm:$0xf]
    %v61 = vld [vmem:[#allocation7 + $0x10] sm:$0xf]
    %v62 = vld [vmem:[#allocation7 + $0x14] sm:$0xf]
    %v63 = vld [vmem:[#allocation7 + $0x18] sm:$0xf]
    %v64 = vld [vmem:[#allocation7 + $0x1c] sm:$0xf]
    %v65 = vld [vmem:[#allocation7 + $0x20] sm:$0xf]
    %v66 = vld [vmem:[#allocation7 + $0x24] sm:$0xf]
    %v67 = vld [vmem:[#allocation7 + $0x28] sm:$0xf]
    %v68 = vld [vmem:[#allocation7 + $0x2c] sm:$0xf]
    %v69 = vld [vmem:[#allocation7 + $0x30] sm:$0xf]
    %v70 = vld [vmem:[#allocation7 + $0x34] sm:$0xf]
    %v71 = vld [vmem:[#allocation7 + $0x38] sm:$0xf]
    %v72 = vld [vmem:[#allocation7 + $0x3c] sm:$0xf]
    %v73 = vld [vmem:[#allocation7 + $0x40] sm:$0xf]
    %v74 = vunpack.c.l.bf16 %v73
    %v75 = vld [vmem:[#allocation7 + $0x48] sm:$0xf]
    %v76 = vld [vmem:[#allocation7 + $0x4c] sm:$0xf]
    %v77 = vld [vmem:[#allocation7 + $0x50] sm:$0xf]
    %v78 = vld [vmem:[#allocation7 + $0x54] sm:$0xf]
    %v79 = vld [vmem:[#allocation7 + $0x58] sm:$0xf]
    %v80 = vld [vmem:[#allocation7 + $0x5c] sm:$0xf]
    %v81 = vld [vmem:[#allocation7 + $0x60] sm:$0xf]
    %v82 = vld [vmem:[#allocation7 + $0x64] sm:$0xf]
    %v83 = vld [vmem:[#allocation7 + $0x68] sm:$0xf]
    %v84 = vld [vmem:[#allocation7 + $0x6c] sm:$0xf]
    %v85 = vld [vmem:[#allocation7 + $0x70] sm:$0xf]
    %v86 = vld [vmem:[#allocation7 + $0x74] sm:$0xf]
    %v87 = vld [vmem:[#allocation7 + $0x78] sm:$0xf]
    %v88 = vld [vmem:[#allocation7 + $0x7c] sm:$0xf]
    %v89 = vld [vmem:[#allocation7 + $0x80] sm:$0xf]
    %v90 = vld [vmem:[#allocation7 + $0x84] sm:$0xf]
    %v91 = vld [vmem:[#allocation7 + $0x88] sm:$0xf]
    %v92 = vld [vmem:[#allocation7 + $0x8c] sm:$0xf]
    %v93 = vld [vmem:[#allocation7 + $0x90] sm:$0xf]
    %v94 = vld [vmem:[#allocation7 + $0x94] sm:$0xf]
    %v95 = vld [vmem:[#allocation7 + $0x98] sm:$0xf]
    %v96 = vld [vmem:[#allocation7 + $0x9c] sm:$0xf]
    %v97 = vld [vmem:[#allocation7 + $0xa0] sm:$0xf]
    %v98 = vld [vmem:[#allocation7 + $0xa4] sm:$0xf]
    %v99 = vld [vmem:[#allocation7 + $0xa8] sm:$0xf]
    %v100 = vld [vmem:[#allocation7 + $0xac] sm:$0xf]
    %v101 = vld [vmem:[#allocation7 + $0xb0] sm:$0xf]
    %v102 = vld [vmem:[#allocation7 + $0xb4] sm:$0xf]
    %v103 = vld [vmem:[#allocation7 + $0xb8] sm:$0xf]
    %v104 = vld [vmem:[#allocation7 + $0xbc] sm:$0xf]
    %v105 = vld [vmem:[#allocation7 + $0xc0] sm:$0xf]
    %v106 = vld [vmem:[#allocation7 + $0xc4] sm:$0xf]
    %v107 = vld [vmem:[#allocation5] sm:$0xff]
    %v108 = vld [vmem:[#allocation5 + $0x8] sm:$0xff]
    %v109 = vld [vmem:[#allocation5 + $0x10] sm:$0xff]
    %v110 = vld [vmem:[#allocation5 + $0x18] sm:$0xff]
    %v111 = vld [vmem:[#allocation2] sm:$0xff]
    %v112 = vld [vmem:[#allocation2 + $0x8] sm:$0xff]
    %v113 = vld [vmem:[#allocation2 + $0x10] sm:$0xff]
    %v114 = vld [vmem:[#allocation2 + $0x18] sm:$0xff]
    %v115 = vpack.c.bf16 %v112, %v111
    %v116 = vpack.c.bf16 %v114, %v113
    %v117 = vlaneseq
    %v118 = vshrl.u32 %v117, 7
    %v119 = vsub.s32 0, %v118
    %v120 = vrot.slane %v74, %v119
    %v137 = vunpack.c.l.b16 %v57
    %v138 = vunpack.c.l.b16 %v58
    %v139 = vunpack.c.l.b16 %v59
    %v140 = vunpack.c.l.b16 %v60
    %v141 = vunpack.c.l.b16 %v61
    %v142 = vunpack.c.l.b16 %v62
    %v143 = vunpack.c.l.b16 %v63
    %v144 = vunpack.c.l.b16 %v64
    %v145 = vunpack.c.l.b16 %v65
    %v146 = vunpack.c.l.b16 %v66
    %v147 = vunpack.c.l.b16 %v67
    %v148 = vunpack.c.l.b16 %v68
    %v149 = vunpack.c.l.b16 %v69
    %v150 = vunpack.c.l.b16 %v70
    %v151 = vunpack.c.l.b16 %v71
    %v152 = vunpack.c.l.b16 %v72
    %v153 = vpack.c.b16 %v138, %v137
    %v154 = vpack.c.b16 %v140, %v139
    %v155 = vpack.c.b16 %v142, %v141
    %v156 = vpack.c.b16 %v144, %v143
    %v157 = vpack.c.b16 %v146, %v145
    %v158 = vpack.c.b16 %v148, %v147
    %v159 = vpack.c.b16 %v150, %v149
    %v160 = vpack.c.b16 %v152, %v151
    %169 = vmatprep.subr.bf16.mxu0 0
    %170 = vmatpush1.bf16.msra.mxu0 %v160
    %171 = vmatprep.subr.bf16.mxu0 0
    %172 = vmatpush1.bf16.msra.mxu0 %v159
    %173 = vmatprep.subr.bf16.mxu0 0
    %174 = vmatpush1.bf16.msra.mxu0 %v158
    %175 = vmatprep.subr.bf16.mxu0 0
    %176 = vmatpush1.bf16.msra.mxu0 %v157
    %177 = vmatprep.subr.bf16.mxu0 0
    %178 = vmatpush1.bf16.msra.mxu0 %v156
    %179 = vmatprep.subr.bf16.mxu0 0
    %180 = vmatpush1.bf16.msra.mxu0 %v155
    %181 = vmatprep.subr.bf16.mxu0 0
    %182 = vmatpush1.bf16.msra.mxu0 %v154
    %183 = vmatprep.subr.bf16.mxu0 0
    %184 = vmatpush1.bf16.msra.mxu0 %v153
    %185 = vmatprep.subr.bf16.mxu0 0
    %186 = vmatpush2.bf16.msra.mxu0 0
    %187 = vmatprep.subr.bf16.mxu0 0
    %188 = vmatpush2.bf16.msra.mxu0 0
    %189 = vmatprep.subr.bf16.mxu0 0
    %190 = vmatpush2.bf16.msra.mxu0 0
    %191 = vmatprep.subr.bf16.mxu0 0
    %192 = vmatpush2.bf16.msra.mxu0 0
    %193 = vmatprep.subr.bf16.mxu0 0
    %194 = vmatpush2.bf16.msra.mxu0 0
    %195 = vmatprep.subr.bf16.mxu0 0
    %196 = vmatpush2.bf16.msra.mxu0 0
    %197 = vmatprep.subr.bf16.mxu0 0
    %198 = vmatpush2.bf16.msra.mxu0 0
    %199 = vmatprep.subr.bf16.mxu0 0
    %200 = vmatpush2.bf16.msra.mxu0 0
    %201 = vmatprep.mubr.bf16.mxu0 0
    %202 = vmatmul.mubr.bf16.gmra.mxu0 %v115
    %v203 = vpop.f32.mrf.mxu0
    %v204 = vadd.f32 %v120, %v203
    %v205 = vpop.f32.mrf.mxu0
    %v206 = vpop.f32.mrf.mxu0
    %v207 = vadd.f32 %v120, %v206
    %v208 = vpop.f32.mrf.mxu0
    %209 = vmatprep.mubr.bf16.mxu0 0
    %210 = vmatmul.mubr.bf16.gmra.mxu0 %v116
    %v211 = vpop.f32.mrf.mxu0
    %v212 = vadd.f32 %v120, %v211
    %v213 = vpop.f32.mrf.mxu0
    %v214 = vpop.f32.mrf.mxu0
    %v215 = vadd.f32 %v120, %v214
    %v216 = vpop.f32.mrf.mxu0
    %217 = vdwg.mxu0
    %v222 = vcombine.high %v204, %v204
    %v224 = vunpack.c.l.s4 1966171168
    %v225 = vunpack.c.0.s8 %v224
    %v226 = vlaneseq
    %v227 = vshrl.u32 %v226, 7
    %v228 = vsub.s32 %v225, %v227
    %v229 = vrot.slane %v204, %v228
    %v231 = vunpack.c.l.s4 1966171168
    %v232 = vunpack.c.0.s8 %v231
    %v233 = vlaneseq
    %v234 = vshrl.u32 %v233, 7
    %v235 = vsub.s32 %v232, %v234
    %v236 = vrot.slane %v222, %v235
    %v237 = vcombine.high %v229, %v229
    %v238 = vcombine.high %v236, %v236
    %v240 = vunpack.c.l.s4 1966171168
    %v241 = vunpack.c.0.s8 %v240
    %v242 = vlaneseq
    %v243 = vshrl.u32 %v242, 7
    %v244 = vsub.s32 %v241, %v243
    %v245 = vrot.slane %v229, %v244
    %v247 = vunpack.c.l.s4 1966171168
    %v248 = vunpack.c.0.s8 %v247
    %v249 = vlaneseq
    %v250 = vshrl.u32 %v249, 7
    %v251 = vsub.s32 %v248, %v250
    %v252 = vrot.slane %v236, %v251
    %v254 = vunpack.c.l.s4 1966171168
    %v255 = vunpack.c.0.s8 %v254
    %v256 = vlaneseq
    %v257 = vshrl.u32 %v256, 7
    %v258 = vsub.s32 %v255, %v257
    %v259 = vrot.slane %v237, %v258
    %v261 = vunpack.c.l.s4 1966171168
    %v262 = vunpack.c.0.s8 %v261
    %v263 = vlaneseq
    %v264 = vshrl.u32 %v263, 7
    %v265 = vsub.s32 %v262, %v264
    %v266 = vrot.slane %v238, %v265
    %v267 = vcombine.high %v245, %v245
    %v268 = vcombine.high %v252, %v252
    %v269 = vcombine.high %v259, %v259
    %v270 = vcombine.high %v266, %v266
    %v271 = vcombine.high %v207, %v207
    %v273 = vunpack.c.l.s4 1966171168
    %v274 = vunpack.c.0.s8 %v273
    %v275 = vlaneseq
    %v276 = vshrl.u32 %v275, 7
    %v277 = vsub.s32 %v274, %v276
    %v278 = vrot.slane %v207, %v277
    %v280 = vunpack.c.l.s4 1966171168
    %v281 = vunpack.c.0.s8 %v280
    %v282 = vlaneseq
    %v283 = vshrl.u32 %v282, 7
    %v284 = vsub.s32 %v281, %v283
    %v285 = vrot.slane %v271, %v284
    %v286 = vcombine.high %v278, %v278
    %v287 = vcombine.high %v285, %v285
    %v289 = vunpack.c.l.s4 1966171168
    %v290 = vunpack.c.0.s8 %v289
    %v291 = vlaneseq
    %v292 = vshrl.u32 %v291, 7
    %v293 = vsub.s32 %v290, %v292
    %v294 = vrot.slane %v278, %v293
    %v296 = vunpack.c.l.s4 1966171168
    %v297 = vunpack.c.0.s8 %v296
    %v298 = vlaneseq
    %v299 = vshrl.u32 %v298, 7
    %v300 = vsub.s32 %v297, %v299
    %v301 = vrot.slane %v285, %v300
    %v303 = vunpack.c.l.s4 1966171168
    %v304 = vunpack.c.0.s8 %v303
    %v305 = vlaneseq
    %v306 = vshrl.u32 %v305, 7
    %v307 = vsub.s32 %v304, %v306
    %v308 = vrot.slane %v286, %v307
    %v310 = vunpack.c.l.s4 1966171168
    %v311 = vunpack.c.0.s8 %v310
    %v312 = vlaneseq
    %v313 = vshrl.u32 %v312, 7
    %v314 = vsub.s32 %v311, %v313
    %v315 = vrot.slane %v287, %v314
    %v316 = vcombine.high %v294, %v294
    %v317 = vcombine.high %v301, %v301
    %v318 = vcombine.high %v308, %v308
    %v319 = vcombine.high %v315, %v315
    %v320 = vcombine.high %v212, %v212
    %v322 = vunpack.c.l.s4 1966171168
    %v323 = vunpack.c.0.s8 %v322
    %v324 = vlaneseq
    %v325 = vshrl.u32 %v324, 7
    %v326 = vsub.s32 %v323, %v325
    %v327 = vrot.slane %v212, %v326
    %v329 = vunpack.c.l.s4 1966171168
    %v330 = vunpack.c.0.s8 %v329
    %v331 = vlaneseq
    %v332 = vshrl.u32 %v331, 7
    %v333 = vsub.s32 %v330, %v332
    %v334 = vrot.slane %v320, %v333
    %v335 = vcombine.high %v327, %v327
    %v336 = vcombine.high %v334, %v334
    %v338 = vunpack.c.l.s4 1966171168
    %v339 = vunpack.c.0.s8 %v338
    %v340 = vlaneseq
    %v341 = vshrl.u32 %v340, 7
    %v342 = vsub.s32 %v339, %v341
    %v343 = vrot.slane %v327, %v342
    %v345 = vunpack.c.l.s4 1966171168
    %v346 = vunpack.c.0.s8 %v345
    %v347 = vlaneseq
    %v348 = vshrl.u32 %v347, 7
    %v349 = vsub.s32 %v346, %v348
    %v350 = vrot.slane %v334, %v349
    %v352 = vunpack.c.l.s4 1966171168
    %v353 = vunpack.c.0.s8 %v352
    %v354 = vlaneseq
    %v355 = vshrl.u32 %v354, 7
    %v356 = vsub.s32 %v353, %v355
    %v357 = vrot.slane %v335, %v356
    %v359 = vunpack.c.l.s4 1966171168
    %v360 = vunpack.c.0.s8 %v359
    %v361 = vlaneseq
    %v362 = vshrl.u32 %v361, 7
    %v363 = vsub.s32 %v360, %v362
    %v364 = vrot.slane %v336, %v363
    %v365 = vcombine.high %v343, %v343
    %v366 = vcombine.high %v350, %v350
    %v367 = vcombine.high %v357, %v357
    %v368 = vcombine.high %v364, %v364
    %v369 = vcombine.high %v215, %v215
    %v371 = vunpack.c.l.s4 1966171168
    %v372 = vunpack.c.0.s8 %v371
    %v373 = vlaneseq
    %v374 = vshrl.u32 %v373, 7
    %v375 = vsub.s32 %v372, %v374
    %v376 = vrot.slane %v215, %v375
    %v378 = vunpack.c.l.s4 1966171168
    %v379 = vunpack.c.0.s8 %v378
    %v380 = vlaneseq
    %v381 = vshrl.u32 %v380, 7
    %v382 = vsub.s32 %v379, %v381
    %v383 = vrot.slane %v369, %v382
    %v384 = vcombine.high %v376, %v376
    %v385 = vcombine.high %v383, %v383
    %v387 = vunpack.c.l.s4 1966171168
    %v388 = vunpack.c.0.s8 %v387
    %v389 = vlaneseq
    %v390 = vshrl.u32 %v389, 7
    %v391 = vsub.s32 %v388, %v390
    %v392 = vrot.slane %v376, %v391
    %v394 = vunpack.c.l.s4 1966171168
    %v395 = vunpack.c.0.s8 %v394
    %v396 = vlaneseq
    %v397 = vshrl.u32 %v396, 7
    %v398 = vsub.s32 %v395, %v397
    %v399 = vrot.slane %v383, %v398
    %v401 = vunpack.c.l.s4 1966171168
    %v402 = vunpack.c.0.s8 %v401
    %v403 = vlaneseq
    %v404 = vshrl.u32 %v403, 7
    %v405 = vsub.s32 %v402, %v404
    %v406 = vrot.slane %v384, %v405
    %v408 = vunpack.c.l.s4 1966171168
    %v409 = vunpack.c.0.s8 %v408
    %v410 = vlaneseq
    %v411 = vshrl.u32 %v410, 7
    %v412 = vsub.s32 %v409, %v411
    %v413 = vrot.slane %v385, %v412
    %v414 = vcombine.high %v392, %v392
    %v415 = vcombine.high %v399, %v399
    %v416 = vcombine.high %v406, %v406
    %v417 = vcombine.high %v413, %v413
    %v418 = vlaneseq
    %v419 = vshrl.u32 %v418, 7
    %v420 = vsub.s32 0, %v419
    %v421 = vrot.slane %v245, %v420
    %v422 = vlaneseq
    %v423 = vshrl.u32 %v422, 7
    %v424 = vsub.s32 0, %v423
    %v425 = vrot.slane %v259, %v424
    %v426 = vlaneseq
    %v427 = vshrl.u32 %v426, 7
    %v428 = vsub.s32 0, %v427
    %v429 = vrot.slane %v267, %v428
    %v430 = vlaneseq
    %v431 = vshrl.u32 %v430, 7
    %v432 = vsub.s32 0, %v431
    %v433 = vrot.slane %v269, %v432
    %v434 = vlaneseq
    %v435 = vshrl.u32 %v434, 7
    %v436 = vsub.s32 0, %v435
    %v437 = vrot.slane %v252, %v436
    %v438 = vlaneseq
    %v439 = vshrl.u32 %v438, 7
    %v440 = vsub.s32 0, %v439
    %v441 = vrot.slane %v266, %v440
    %v442 = vlaneseq
    %v443 = vshrl.u32 %v442, 7
    %v444 = vsub.s32 0, %v443
    %v445 = vrot.slane %v268, %v444
    %v446 = vlaneseq
    %v447 = vshrl.u32 %v446, 7
    %v448 = vsub.s32 0, %v447
    %v449 = vrot.slane %v270, %v448
    %v450 = vlaneseq
    %v451 = vshrl.u32 %v450, 7
    %v452 = vsub.s32 0, %v451
    %v453 = vrot.slane %v294, %v452
    %v454 = vlaneseq
    %v455 = vshrl.u32 %v454, 7
    %v456 = vsub.s32 0, %v455
    %v457 = vrot.slane %v308, %v456
    %v458 = vlaneseq
    %v459 = vshrl.u32 %v458, 7
    %v460 = vsub.s32 0, %v459
    %v461 = vrot.slane %v316, %v460
    %v462 = vlaneseq
    %v463 = vshrl.u32 %v462, 7
    %v464 = vsub.s32 0, %v463
    %v465 = vrot.slane %v318, %v464
    %v466 = vlaneseq
    %v467 = vshrl.u32 %v466, 7
    %v468 = vsub.s32 0, %v467
    %v469 = vrot.slane %v301, %v468
    %v470 = vlaneseq
    %v471 = vshrl.u32 %v470, 7
    %v472 = vsub.s32 0, %v471
    %v473 = vrot.slane %v315, %v472
    %v474 = vlaneseq
    %v475 = vshrl.u32 %v474, 7
    %v476 = vsub.s32 0, %v475
    %v477 = vrot.slane %v317, %v476
    %v478 = vlaneseq
    %v479 = vshrl.u32 %v478, 7
    %v480 = vsub.s32 0, %v479
    %v481 = vrot.slane %v319, %v480
    %v482 = vlaneseq
    %v483 = vshrl.u32 %v482, 7
    %v484 = vsub.s32 0, %v483
    %v485 = vrot.slane %v343, %v484
    %v486 = vlaneseq
    %v487 = vshrl.u32 %v486, 7
    %v488 = vsub.s32 0, %v487
    %v489 = vrot.slane %v357, %v488
    %v490 = vlaneseq
    %v491 = vshrl.u32 %v490, 7
    %v492 = vsub.s32 0, %v491
    %v493 = vrot.slane %v365, %v492
    %v494 = vlaneseq
    %v495 = vshrl.u32 %v494, 7
    %v496 = vsub.s32 0, %v495
    %v497 = vrot.slane %v367, %v496
    %v498 = vlaneseq
    %v499 = vshrl.u32 %v498, 7
    %v500 = vsub.s32 0, %v499
    %v501 = vrot.slane %v350, %v500
    %v502 = vlaneseq
    %v503 = vshrl.u32 %v502, 7
    %v504 = vsub.s32 0, %v503
    %v505 = vrot.slane %v364, %v504
    %v506 = vlaneseq
    %v507 = vshrl.u32 %v506, 7
    %v508 = vsub.s32 0, %v507
    %v509 = vrot.slane %v366, %v508
    %v510 = vlaneseq
    %v511 = vshrl.u32 %v510, 7
    %v512 = vsub.s32 0, %v511
    %v513 = vrot.slane %v368, %v512
    %v514 = vlaneseq
    %v515 = vshrl.u32 %v514, 7
    %v516 = vsub.s32 0, %v515
    %v517 = vrot.slane %v392, %v516
    %v518 = vlaneseq
    %v519 = vshrl.u32 %v518, 7
    %v520 = vsub.s32 0, %v519
    %v521 = vrot.slane %v406, %v520
    %v522 = vlaneseq
    %v523 = vshrl.u32 %v522, 7
    %v524 = vsub.s32 0, %v523
    %v525 = vrot.slane %v414, %v524
    %v526 = vlaneseq
    %v527 = vshrl.u32 %v526, 7
    %v528 = vsub.s32 0, %v527
    %v529 = vrot.slane %v416, %v528
    %v530 = vlaneseq
    %v531 = vshrl.u32 %v530, 7
    %v532 = vsub.s32 0, %v531
    %v533 = vrot.slane %v399, %v532
    %v534 = vlaneseq
    %v535 = vshrl.u32 %v534, 7
    %v536 = vsub.s32 0, %v535
    %v537 = vrot.slane %v413, %v536
    %v538 = vlaneseq
    %v539 = vshrl.u32 %v538, 7
    %v540 = vsub.s32 0, %v539
    %v541 = vrot.slane %v415, %v540
    %v542 = vlaneseq
    %v543 = vshrl.u32 %v542, 7
    %v544 = vsub.s32 0, %v543
    %v545 = vrot.slane %v417, %v544
    %v578 = vadd.f32 %v421, %v204
    %v579 = vadd.f32 %v425, %v204
    %v580 = vadd.f32 %v429, %v204
    %v581 = vadd.f32 %v433, %v204
    %v582 = vadd.f32 %v437, %v204
    %v583 = vadd.f32 %v441, %v204
    %v584 = vadd.f32 %v445, %v204
    %v585 = vadd.f32 %v449, %v204
    %v586 = vadd.f32 %v453, %v207
    %v587 = vadd.f32 %v457, %v207
    %v588 = vadd.f32 %v461, %v207
    %v589 = vadd.f32 %v465, %v207
    %v590 = vadd.f32 %v469, %v207
    %v591 = vadd.f32 %v473, %v207
    %v592 = vadd.f32 %v477, %v207
    %v593 = vadd.f32 %v481, %v207
    %v594 = vadd.f32 %v485, %v212
    %v595 = vadd.f32 %v489, %v212
    %v596 = vadd.f32 %v493, %v212
    %v597 = vadd.f32 %v497, %v212
    %v598 = vadd.f32 %v501, %v212
    %v599 = vadd.f32 %v505, %v212
    %v600 = vadd.f32 %v509, %v212
    %v601 = vadd.f32 %v513, %v212
    %v602 = vadd.f32 %v517, %v215
    %v603 = vadd.f32 %v521, %v215
    %v604 = vadd.f32 %v525, %v215
    %v605 = vadd.f32 %v529, %v215
    %v606 = vadd.f32 %v533, %v215
    %v607 = vadd.f32 %v537, %v215
    %v608 = vadd.f32 %v541, %v215
    %v609 = vadd.f32 %v545, %v215
    %vm610 = vcmp.gt.f32.partialorder %v578, 0.0
    %vm611 = vcmp.gt.f32.partialorder %v579, 0.0
    %vm612 = vcmp.gt.f32.partialorder %v580, 0.0
    %vm613 = vcmp.gt.f32.partialorder %v581, 0.0
    %vm614 = vcmp.gt.f32.partialorder %v582, 0.0
    %vm615 = vcmp.gt.f32.partialorder %v583, 0.0
    %vm616 = vcmp.gt.f32.partialorder %v584, 0.0
    %vm617 = vcmp.gt.f32.partialorder %v585, 0.0
    %vm618 = vcmp.gt.f32.partialorder %v586, 0.0
    %vm619 = vcmp.gt.f32.partialorder %v587, 0.0
    %vm620 = vcmp.gt.f32.partialorder %v588, 0.0
    %vm621 = vcmp.gt.f32.partialorder %v589, 0.0
    %vm622 = vcmp.gt.f32.partialorder %v590, 0.0
    %vm623 = vcmp.gt.f32.partialorder %v591, 0.0
    %vm624 = vcmp.gt.f32.partialorder %v592, 0.0
    %vm625 = vcmp.gt.f32.partialorder %v593, 0.0
    %vm626 = vcmp.gt.f32.partialorder %v594, 0.0
    %vm627 = vcmp.gt.f32.partialorder %v595, 0.0
    %vm628 = vcmp.gt.f32.partialorder %v596, 0.0
    %vm629 = vcmp.gt.f32.partialorder %v597, 0.0
    %vm630 = vcmp.gt.f32.partialorder %v598, 0.0
    %vm631 = vcmp.gt.f32.partialorder %v599, 0.0
    %vm632 = vcmp.gt.f32.partialorder %v600, 0.0
    %vm633 = vcmp.gt.f32.partialorder %v601, 0.0
    %vm634 = vcmp.gt.f32.partialorder %v602, 0.0
    %vm635 = vcmp.gt.f32.partialorder %v603, 0.0
    %vm636 = vcmp.gt.f32.partialorder %v604, 0.0
    %vm637 = vcmp.gt.f32.partialorder %v605, 0.0
    %vm638 = vcmp.gt.f32.partialorder %v606, 0.0
    %vm639 = vcmp.gt.f32.partialorder %v607, 0.0
    %vm640 = vcmp.gt.f32.partialorder %v608, 0.0
    %vm641 = vcmp.gt.f32.partialorder %v609, 0.0
    %v642 = vmul.f32 %v578, 0.2
    %v643 = vmul.f32 %v579, 0.2
    %v644 = vmul.f32 %v580, 0.2
    %v645 = vmul.f32 %v581, 0.2
    %v646 = vmul.f32 %v582, 0.2
    %v647 = vmul.f32 %v583, 0.2
    %v648 = vmul.f32 %v584, 0.2
    %v649 = vmul.f32 %v585, 0.2
    %v650 = vmul.f32 %v586, 0.2
    %v651 = vmul.f32 %v587, 0.2
    %v652 = vmul.f32 %v588, 0.2
    %v653 = vmul.f32 %v589, 0.2
    %v654 = vmul.f32 %v590, 0.2
    %v655 = vmul.f32 %v591, 0.2
    %v656 = vmul.f32 %v592, 0.2
    %v657 = vmul.f32 %v593, 0.2
    %v658 = vmul.f32 %v594, 0.2
    %v659 = vmul.f32 %v595, 0.2
    %v660 = vmul.f32 %v596, 0.2
    %v661 = vmul.f32 %v597, 0.2
    %v662 = vmul.f32 %v598, 0.2
    %v663 = vmul.f32 %v599, 0.2
    %v664 = vmul.f32 %v600, 0.2
    %v665 = vmul.f32 %v601, 0.2
    %v666 = vmul.f32 %v602, 0.2
    %v667 = vmul.f32 %v603, 0.2
    %v668 = vmul.f32 %v604, 0.2
    %v669 = vmul.f32 %v605, 0.2
    %v670 = vmul.f32 %v606, 0.2
    %v671 = vmul.f32 %v607, 0.2
    %v672 = vmul.f32 %v608, 0.2
    %v673 = vmul.f32 %v609, 0.2
    %v674 = vsel %vm610, %v578, %v642
    %v675 = vsel %vm611, %v579, %v643
    %v676 = vsel %vm612, %v580, %v644
    %v677 = vsel %vm613, %v581, %v645
    %v678 = vsel %vm614, %v582, %v646
    %v679 = vsel %vm615, %v583, %v647
    %v680 = vsel %vm616, %v584, %v648
    %v681 = vsel %vm617, %v585, %v649
    %v682 = vsel %vm618, %v586, %v650
    %v683 = vsel %vm619, %v587, %v651
    %v684 = vsel %vm620, %v588, %v652
    %v685 = vsel %vm621, %v589, %v653
    %v686 = vsel %vm622, %v590, %v654
    %v687 = vsel %vm623, %v591, %v655
    %v688 = vsel %vm624, %v592, %v656
    %v689 = vsel %vm625, %v593, %v657
    %v690 = vsel %vm626, %v594, %v658
    %v691 = vsel %vm627, %v595, %v659
    %v692 = vsel %vm628, %v596, %v660
    %v693 = vsel %vm629, %v597, %v661
    %v694 = vsel %vm630, %v598, %v662
    %v695 = vsel %vm631, %v599, %v663
    %v696 = vsel %vm632, %v600, %v664
    %v697 = vsel %vm633, %v601, %v665
    %v698 = vsel %vm634, %v602, %v666
    %v699 = vsel %vm635, %v603, %v667
    %v700 = vsel %vm636, %v604, %v668
    %v701 = vsel %vm637, %v605, %v669
    %v702 = vsel %vm638, %v606, %v670
    %v703 = vsel %vm639, %v607, %v671
    %v704 = vsel %vm640, %v608, %v672
    %v705 = vsel %vm641, %v609, %v673
    %v706 = vlaneseq
    %v707 = vshrl.u32 %v706, 7
    %v708 = vsub.s32 1, %v707
    %v709 = vrot.slane %v74, %v708
    %v710 = vmul.f32 %v674, %v709
    %v711 = vmul.f32 %v675, %v709
    %v712 = vmul.f32 %v676, %v709
    %v713 = vmul.f32 %v677, %v709
    %v714 = vmul.f32 %v678, %v709
    %v715 = vmul.f32 %v679, %v709
    %v716 = vmul.f32 %v680, %v709
    %v717 = vmul.f32 %v681, %v709
    %v718 = vmul.f32 %v682, %v709
    %v719 = vmul.f32 %v683, %v709
    %v720 = vmul.f32 %v684, %v709
    %v721 = vmul.f32 %v685, %v709
    %v722 = vmul.f32 %v686, %v709
    %v723 = vmul.f32 %v687, %v709
    %v724 = vmul.f32 %v688, %v709
    %v725 = vmul.f32 %v689, %v709
    %v726 = vmul.f32 %v690, %v709
    %v727 = vmul.f32 %v691, %v709
    %v728 = vmul.f32 %v692, %v709
    %v729 = vmul.f32 %v693, %v709
    %v730 = vmul.f32 %v694, %v709
    %v731 = vmul.f32 %v695, %v709
    %v732 = vmul.f32 %v696, %v709
    %v733 = vmul.f32 %v697, %v709
    %v734 = vmul.f32 %v698, %v709
    %v735 = vmul.f32 %v699, %v709
    %v736 = vmul.f32 %v700, %v709
    %v737 = vmul.f32 %v701, %v709
    %v738 = vmul.f32 %v702, %v709
    %v739 = vmul.f32 %v703, %v709
    %v740 = vmul.f32 %v704, %v709
    %v741 = vmul.f32 %v705, %v709
    %742 = vadd.xlane.f32.xlu0 %v710
    %v743 = vpop.xlane.xlu0 %742
    %744 = vadd.xlane.f32.xlu0 %v711
    %v745 = vpop.xlane.xlu0 %744
    %746 = vadd.xlane.f32.xlu0 %v712
    %v747 = vpop.xlane.xlu0 %746
    %748 = vadd.xlane.f32.xlu0 %v713
    %v749 = vpop.xlane.xlu0 %748
    %750 = vadd.xlane.f32.xlu0 %v714
    %v751 = vpop.xlane.xlu0 %750
    %752 = vadd.xlane.f32.xlu0 %v715
    %v753 = vpop.xlane.xlu0 %752
    %754 = vadd.xlane.f32.xlu0 %v716
    %v755 = vpop.xlane.xlu0 %754
    %756 = vadd.xlane.f32.xlu0 %v717
    %v757 = vpop.xlane.xlu0 %756
    %758 = vadd.xlane.f32.xlu0 %v718
    %v759 = vpop.xlane.xlu0 %758
    %760 = vadd.xlane.f32.xlu0 %v719
    %v761 = vpop.xlane.xlu0 %760
    %762 = vadd.xlane.f32.xlu0 %v720
    %v763 = vpop.xlane.xlu0 %762
    %764 = vadd.xlane.f32.xlu0 %v721
    %v765 = vpop.xlane.xlu0 %764
    %766 = vadd.xlane.f32.xlu0 %v722
    %v767 = vpop.xlane.xlu0 %766
    %768 = vadd.xlane.f32.xlu0 %v723
    %v769 = vpop.xlane.xlu0 %768
    %770 = vadd.xlane.f32.xlu0 %v724
    %v771 = vpop.xlane.xlu0 %770
    %772 = vadd.xlane.f32.xlu0 %v725
    %v773 = vpop.xlane.xlu0 %772
    %774 = vadd.xlane.f32.xlu0 %v726
    %v775 = vpop.xlane.xlu0 %774
    %776 = vadd.xlane.f32.xlu0 %v727
    %v777 = vpop.xlane.xlu0 %776
    %778 = vadd.xlane.f32.xlu0 %v728
    %v779 = vpop.xlane.xlu0 %778
    %780 = vadd.xlane.f32.xlu0 %v729
    %v781 = vpop.xlane.xlu0 %780
    %782 = vadd.xlane.f32.xlu0 %v730
    %v783 = vpop.xlane.xlu0 %782
    %784 = vadd.xlane.f32.xlu0 %v731
    %v785 = vpop.xlane.xlu0 %784
    %786 = vadd.xlane.f32.xlu0 %v732
    %v787 = vpop.xlane.xlu0 %786
    %788 = vadd.xlane.f32.xlu0 %v733
    %v789 = vpop.xlane.xlu0 %788
    %790 = vadd.xlane.f32.xlu0 %v734
    %v791 = vpop.xlane.xlu0 %790
    %792 = vadd.xlane.f32.xlu0 %v735
    %v793 = vpop.xlane.xlu0 %792
    %794 = vadd.xlane.f32.xlu0 %v736
    %v795 = vpop.xlane.xlu0 %794
    %796 = vadd.xlane.f32.xlu0 %v737
    %v797 = vpop.xlane.xlu0 %796
    %798 = vadd.xlane.f32.xlu0 %v738
    %v799 = vpop.xlane.xlu0 %798
    %800 = vadd.xlane.f32.xlu0 %v739
    %v801 = vpop.xlane.xlu0 %800
    %802 = vadd.xlane.f32.xlu0 %v740
    %v803 = vpop.xlane.xlu0 %802
    %804 = vadd.xlane.f32.xlu0 %v741
    %v805 = vpop.xlane.xlu0 %804
    %v810 = vlaneseq
    %v811 = vshrl.u32 %v810, 7
    %v812 = vsub.s32 0, %v811
    %v813 = vrot.slane %v107, %v812
    %815 = vbcast.lane.b32.xlu0 %v813, 256
    %v816 = vpop.permute.xlu0 %815
    %v817 = vlaneseq
    %v818 = vshrl.u32 %v817, 7
    %v819 = vsub.s32 1, %v818
    %v820 = vrot.slane %v107, %v819
    %822 = vbcast.lane.b32.xlu0 %v820, 256
    %v823 = vpop.permute.xlu0 %822
    %v824 = vlaneseq
    %v825 = vshrl.u32 %v824, 7
    %v826 = vsub.s32 2, %v825
    %v827 = vrot.slane %v107, %v826
    %829 = vbcast.lane.b32.xlu0 %v827, 256
    %v830 = vpop.permute.xlu0 %829
    %v831 = vlaneseq
    %v832 = vshrl.u32 %v831, 7
    %v833 = vsub.s32 3, %v832
    %v834 = vrot.slane %v107, %v833
    %836 = vbcast.lane.b32.xlu0 %v834, 256
    %v837 = vpop.permute.xlu0 %836
    %v838 = vlaneseq
    %v839 = vshrl.u32 %v838, 7
    %v840 = vsub.s32 4, %v839
    %v841 = vrot.slane %v107, %v840
    %843 = vbcast.lane.b32.xlu0 %v841, 256
    %v844 = vpop.permute.xlu0 %843
    %v845 = vlaneseq
    %v846 = vshrl.u32 %v845, 7
    %v847 = vsub.s32 5, %v846
    %v848 = vrot.slane %v107, %v847
    %850 = vbcast.lane.b32.xlu0 %v848, 256
    %v851 = vpop.permute.xlu0 %850
    %v852 = vlaneseq
    %v853 = vshrl.u32 %v852, 7
    %v854 = vsub.s32 6, %v853
    %v855 = vrot.slane %v107, %v854
    %857 = vbcast.lane.b32.xlu0 %v855, 256
    %v858 = vpop.permute.xlu0 %857
    %v859 = vlaneseq
    %v860 = vshrl.u32 %v859, 7
    %v861 = vsub.s32 7, %v860
    %v862 = vrot.slane %v107, %v861
    %864 = vbcast.lane.b32.xlu0 %v862, 256
    %v865 = vpop.permute.xlu0 %864
    %v866 = vlaneseq
    %v867 = vshrl.u32 %v866, 7
    %v868 = vsub.s32 0, %v867
    %v869 = vrot.slane %v108, %v868
    %871 = vbcast.lane.b32.xlu0 %v869, 256
    %v872 = vpop.permute.xlu0 %871
    %v873 = vlaneseq
    %v874 = vshrl.u32 %v873, 7
    %v875 = vsub.s32 1, %v874
    %v876 = vrot.slane %v108, %v875
    %878 = vbcast.lane.b32.xlu0 %v876, 256
    %v879 = vpop.permute.xlu0 %878
    %v880 = vlaneseq
    %v881 = vshrl.u32 %v880, 7
    %v882 = vsub.s32 2, %v881
    %v883 = vrot.slane %v108, %v882
    %885 = vbcast.lane.b32.xlu0 %v883, 256
    %v886 = vpop.permute.xlu0 %885
    %v887 = vlaneseq
    %v888 = vshrl.u32 %v887, 7
    %v889 = vsub.s32 3, %v888
    %v890 = vrot.slane %v108, %v889
    %892 = vbcast.lane.b32.xlu0 %v890, 256
    %v893 = vpop.permute.xlu0 %892
    %v894 = vlaneseq
    %v895 = vshrl.u32 %v894, 7
    %v896 = vsub.s32 4, %v895
    %v897 = vrot.slane %v108, %v896
    %899 = vbcast.lane.b32.xlu0 %v897, 256
    %v900 = vpop.permute.xlu0 %899
    %v901 = vlaneseq
    %v902 = vshrl.u32 %v901, 7
    %v903 = vsub.s32 5, %v902
    %v904 = vrot.slane %v108, %v903
    %906 = vbcast.lane.b32.xlu0 %v904, 256
    %v907 = vpop.permute.xlu0 %906
    %v908 = vlaneseq
    %v909 = vshrl.u32 %v908, 7
    %v910 = vsub.s32 6, %v909
    %v911 = vrot.slane %v108, %v910
    %913 = vbcast.lane.b32.xlu0 %v911, 256
    %v914 = vpop.permute.xlu0 %913
    %v915 = vlaneseq
    %v916 = vshrl.u32 %v915, 7
    %v917 = vsub.s32 7, %v916
    %v918 = vrot.slane %v108, %v917
    %920 = vbcast.lane.b32.xlu0 %v918, 256
    %v921 = vpop.permute.xlu0 %920
    %v922 = vlaneseq
    %v923 = vshrl.u32 %v922, 7
    %v924 = vsub.s32 0, %v923
    %v925 = vrot.slane %v109, %v924
    %927 = vbcast.lane.b32.xlu0 %v925, 256
    %v928 = vpop.permute.xlu0 %927
    %v929 = vlaneseq
    %v930 = vshrl.u32 %v929, 7
    %v931 = vsub.s32 1, %v930
    %v932 = vrot.slane %v109, %v931
    %934 = vbcast.lane.b32.xlu0 %v932, 256
    %v935 = vpop.permute.xlu0 %934
    %v936 = vlaneseq
    %v937 = vshrl.u32 %v936, 7
    %v938 = vsub.s32 2, %v937
    %v939 = vrot.slane %v109, %v938
    %941 = vbcast.lane.b32.xlu0 %v939, 256
    %v942 = vpop.permute.xlu0 %941
    %v943 = vlaneseq
    %v944 = vshrl.u32 %v943, 7
    %v945 = vsub.s32 3, %v944
    %v946 = vrot.slane %v109, %v945
    %948 = vbcast.lane.b32.xlu0 %v946, 256
    %v949 = vpop.permute.xlu0 %948
    %v950 = vlaneseq
    %v951 = vshrl.u32 %v950, 7
    %v952 = vsub.s32 4, %v951
    %v953 = vrot.slane %v109, %v952
    %955 = vbcast.lane.b32.xlu0 %v953, 256
    %v956 = vpop.permute.xlu0 %955
    %v957 = vlaneseq
    %v958 = vshrl.u32 %v957, 7
    %v959 = vsub.s32 5, %v958
    %v960 = vrot.slane %v109, %v959
    %962 = vbcast.lane.b32.xlu0 %v960, 256
    %v963 = vpop.permute.xlu0 %962
    %v964 = vlaneseq
    %v965 = vshrl.u32 %v964, 7
    %v966 = vsub.s32 6, %v965
    %v967 = vrot.slane %v109, %v966
    %969 = vbcast.lane.b32.xlu0 %v967, 256
    %v970 = vpop.permute.xlu0 %969
    %v971 = vlaneseq
    %v972 = vshrl.u32 %v971, 7
    %v973 = vsub.s32 7, %v972
    %v974 = vrot.slane %v109, %v973
    %976 = vbcast.lane.b32.xlu0 %v974, 256
    %v977 = vpop.permute.xlu0 %976
    %v978 = vlaneseq
    %v979 = vshrl.u32 %v978, 7
    %v980 = vsub.s32 0, %v979
    %v981 = vrot.slane %v110, %v980
    %983 = vbcast.lane.b32.xlu0 %v981, 256
    %v984 = vpop.permute.xlu0 %983
    %v985 = vlaneseq
    %v986 = vshrl.u32 %v985, 7
    %v987 = vsub.s32 1, %v986
    %v988 = vrot.slane %v110, %v987
    %990 = vbcast.lane.b32.xlu0 %v988, 256
    %v991 = vpop.permute.xlu0 %990
    %v992 = vlaneseq
    %v993 = vshrl.u32 %v992, 7
    %v994 = vsub.s32 2, %v993
    %v995 = vrot.slane %v110, %v994
    %997 = vbcast.lane.b32.xlu0 %v995, 256
    %v998 = vpop.permute.xlu0 %997
    %v999 = vlaneseq
    %v1000 = vshrl.u32 %v999, 7
    %v1001 = vsub.s32 3, %v1000
    %v1002 = vrot.slane %v110, %v1001
    %1004 = vbcast.lane.b32.xlu0 %v1002, 256
    %v1005 = vpop.permute.xlu0 %1004
    %v1006 = vlaneseq
    %v1007 = vshrl.u32 %v1006, 7
    %v1008 = vsub.s32 4, %v1007
    %v1009 = vrot.slane %v110, %v1008
    %1011 = vbcast.lane.b32.xlu0 %v1009, 256
    %v1012 = vpop.permute.xlu0 %1011
    %v1013 = vlaneseq
    %v1014 = vshrl.u32 %v1013, 7
    %v1015 = vsub.s32 5, %v1014
    %v1016 = vrot.slane %v110, %v1015
    %1018 = vbcast.lane.b32.xlu0 %v1016, 256
    %v1019 = vpop.permute.xlu0 %1018
    %v1020 = vlaneseq
    %v1021 = vshrl.u32 %v1020, 7
    %v1022 = vsub.s32 6, %v1021
    %v1023 = vrot.slane %v110, %v1022
    %1025 = vbcast.lane.b32.xlu0 %v1023, 256
    %v1026 = vpop.permute.xlu0 %1025
    %v1027 = vlaneseq
    %v1028 = vshrl.u32 %v1027, 7
    %v1029 = vsub.s32 7, %v1028
    %v1030 = vrot.slane %v110, %v1029
    %1032 = vbcast.lane.b32.xlu0 %v1030, 256
    %v1033 = vpop.permute.xlu0 %1032
    %v1066 = vadd.f32 %v743, %v816
    %v1067 = vadd.f32 %v745, %v823
    %v1068 = vadd.f32 %v747, %v830
    %v1069 = vadd.f32 %v749, %v837
    %v1070 = vadd.f32 %v751, %v844
    %v1071 = vadd.f32 %v753, %v851
    %v1072 = vadd.f32 %v755, %v858
    %v1073 = vadd.f32 %v757, %v865
    %v1074 = vadd.f32 %v759, %v872
    %v1075 = vadd.f32 %v761, %v879
    %v1076 = vadd.f32 %v763, %v886
    %v1077 = vadd.f32 %v765, %v893
    %v1078 = vadd.f32 %v767, %v900
    %v1079 = vadd.f32 %v769, %v907
    %v1080 = vadd.f32 %v771, %v914
    %v1081 = vadd.f32 %v773, %v921
    %v1082 = vadd.f32 %v775, %v928
    %v1083 = vadd.f32 %v777, %v935
    %v1084 = vadd.f32 %v779, %v942
    %v1085 = vadd.f32 %v781, %v949
    %v1086 = vadd.f32 %v783, %v956
    %v1087 = vadd.f32 %v785, %v963
    %v1088 = vadd.f32 %v787, %v970
    %v1089 = vadd.f32 %v789, %v977
    %v1090 = vadd.f32 %v791, %v984
    %v1091 = vadd.f32 %v793, %v991
    %v1092 = vadd.f32 %v795, %v998
    %v1093 = vadd.f32 %v797, %v1005
    %v1094 = vadd.f32 %v799, %v1012
    %v1095 = vadd.f32 %v801, %v1019
    %v1096 = vadd.f32 %v803, %v1026
    %v1097 = vadd.f32 %v805, %v1033
    %1130 = vset.pattern.permute.xlu0 0
    %1131 = vperm.xlu0 %1130, %v1066
    %v1132 = vpop.permute.xlu0 %1131
    %1133 = vset.pattern.permute.xlu0 0
    %1134 = vperm.xlu0 %1133, %v1067
    %v1135 = vpop.permute.xlu0 %1134
    %1136 = vset.pattern.permute.xlu0 0
    %1137 = vperm.xlu0 %1136, %v1068
    %v1138 = vpop.permute.xlu0 %1137
    %1139 = vset.pattern.permute.xlu0 0
    %1140 = vperm.xlu0 %1139, %v1069
    %v1141 = vpop.permute.xlu0 %1140
    %1142 = vset.pattern.permute.xlu0 0
    %1143 = vperm.xlu0 %1142, %v1070
    %v1144 = vpop.permute.xlu0 %1143
    %1145 = vset.pattern.permute.xlu0 0
    %1146 = vperm.xlu0 %1145, %v1071
    %v1147 = vpop.permute.xlu0 %1146
    %1148 = vset.pattern.permute.xlu0 0
    %1149 = vperm.xlu0 %1148, %v1072
    %v1150 = vpop.permute.xlu0 %1149
    %1151 = vset.pattern.permute.xlu0 0
    %1152 = vperm.xlu0 %1151, %v1073
    %v1153 = vpop.permute.xlu0 %1152
    %1154 = vset.pattern.permute.xlu0 0
    %1155 = vperm.xlu0 %1154, %v1074
    %v1156 = vpop.permute.xlu0 %1155
    %1157 = vset.pattern.permute.xlu0 0
    %1158 = vperm.xlu0 %1157, %v1075
    %v1159 = vpop.permute.xlu0 %1158
    %1160 = vset.pattern.permute.xlu0 0
    %1161 = vperm.xlu0 %1160, %v1076
    %v1162 = vpop.permute.xlu0 %1161
    %1163 = vset.pattern.permute.xlu0 0
    %1164 = vperm.xlu0 %1163, %v1077
    %v1165 = vpop.permute.xlu0 %1164
    %1166 = vset.pattern.permute.xlu0 0
    %1167 = vperm.xlu0 %1166, %v1078
    %v1168 = vpop.permute.xlu0 %1167
    %1169 = vset.pattern.permute.xlu0 0
    %1170 = vperm.xlu0 %1169, %v1079
    %v1171 = vpop.permute.xlu0 %1170
    %1172 = vset.pattern.permute.xlu0 0
    %1173 = vperm.xlu0 %1172, %v1080
    %v1174 = vpop.permute.xlu0 %1173
    %1175 = vset.pattern.permute.xlu0 0
    %1176 = vperm.xlu0 %1175, %v1081
    %v1177 = vpop.permute.xlu0 %1176
    %1178 = vset.pattern.permute.xlu0 0
    %1179 = vperm.xlu0 %1178, %v1082
    %v1180 = vpop.permute.xlu0 %1179
    %1181 = vset.pattern.permute.xlu0 0
    %1182 = vperm.xlu0 %1181, %v1083
    %v1183 = vpop.permute.xlu0 %1182
    %1184 = vset.pattern.permute.xlu0 0
    %1185 = vperm.xlu0 %1184, %v1084
    %v1186 = vpop.permute.xlu0 %1185
    %1187 = vset.pattern.permute.xlu0 0
    %1188 = vperm.xlu0 %1187, %v1085
    %v1189 = vpop.permute.xlu0 %1188
    %1190 = vset.pattern.permute.xlu0 0
    %1191 = vperm.xlu0 %1190, %v1086
    %v1192 = vpop.permute.xlu0 %1191
    %1193 = vset.pattern.permute.xlu0 0
    %1194 = vperm.xlu0 %1193, %v1087
    %v1195 = vpop.permute.xlu0 %1194
    %1196 = vset.pattern.permute.xlu0 0
    %1197 = vperm.xlu0 %1196, %v1088
    %v1198 = vpop.permute.xlu0 %1197
    %1199 = vset.pattern.permute.xlu0 0
    %1200 = vperm.xlu0 %1199, %v1089
    %v1201 = vpop.permute.xlu0 %1200
    %1202 = vset.pattern.permute.xlu0 0
    %1203 = vperm.xlu0 %1202, %v1090
    %v1204 = vpop.permute.xlu0 %1203
    %1205 = vset.pattern.permute.xlu0 0
    %1206 = vperm.xlu0 %1205, %v1091
    %v1207 = vpop.permute.xlu0 %1206
    %1208 = vset.pattern.permute.xlu0 0
    %1209 = vperm.xlu0 %1208, %v1092
    %v1210 = vpop.permute.xlu0 %1209
    %1211 = vset.pattern.permute.xlu0 0
    %1212 = vperm.xlu0 %1211, %v1093
    %v1213 = vpop.permute.xlu0 %1212
    %1214 = vset.pattern.permute.xlu0 0
    %1215 = vperm.xlu0 %1214, %v1094
    %v1216 = vpop.permute.xlu0 %1215
    %1217 = vset.pattern.permute.xlu0 0
    %1218 = vperm.xlu0 %1217, %v1095
    %v1219 = vpop.permute.xlu0 %1218
    %1220 = vset.pattern.permute.xlu0 0
    %1221 = vperm.xlu0 %1220, %v1096
    %v1222 = vpop.permute.xlu0 %1221
    %1223 = vset.pattern.permute.xlu0 0
    %1224 = vperm.xlu0 %1223, %v1097
    %v1225 = vpop.permute.xlu0 %1224
    %v1226 = vlaneseq
    %v1227 = vand.u32 %v1226, 127
    %v1228 = vlaneseq
    %v1229 = vshrl.u32 %v1228, 7
    %v1230 = vsub.s32 %v1227, %v1229
    %v1231 = vrot.slane %v1132, %v1230
    %v1232 = vlaneseq
    %v1233 = vshrl.u32 %v1232, 7
    %v1234 = vsub.s32 %v1227, %v1233
    %v1235 = vrot.slane %v1135, %v1234
    %v1236 = vlaneseq
    %v1237 = vshrl.u32 %v1236, 7
    %v1238 = vsub.s32 %v1227, %v1237
    %v1239 = vrot.slane %v1138, %v1238
    %v1240 = vlaneseq
    %v1241 = vshrl.u32 %v1240, 7
    %v1242 = vsub.s32 %v1227, %v1241
    %v1243 = vrot.slane %v1141, %v1242
    %v1244 = vlaneseq
    %v1245 = vshrl.u32 %v1244, 7
    %v1246 = vsub.s32 %v1227, %v1245
    %v1247 = vrot.slane %v1144, %v1246
    %v1248 = vlaneseq
    %v1249 = vshrl.u32 %v1248, 7
    %v1250 = vsub.s32 %v1227, %v1249
    %v1251 = vrot.slane %v1147, %v1250
    %v1252 = vlaneseq
    %v1253 = vshrl.u32 %v1252, 7
    %v1254 = vsub.s32 %v1227, %v1253
    %v1255 = vrot.slane %v1150, %v1254
    %v1256 = vlaneseq
    %v1257 = vshrl.u32 %v1256, 7
    %v1258 = vsub.s32 %v1227, %v1257
    %v1259 = vrot.slane %v1153, %v1258
    %v1260 = vlaneseq
    %v1261 = vshrl.u32 %v1260, 7
    %v1262 = vsub.s32 %v1227, %v1261
    %v1263 = vrot.slane %v1156, %v1262
    %v1264 = vlaneseq
    %v1265 = vshrl.u32 %v1264, 7
    %v1266 = vsub.s32 %v1227, %v1265
    %v1267 = vrot.slane %v1159, %v1266
    %v1268 = vlaneseq
    %v1269 = vshrl.u32 %v1268, 7
    %v1270 = vsub.s32 %v1227, %v1269
    %v1271 = vrot.slane %v1162, %v1270
    %v1272 = vlaneseq
    %v1273 = vshrl.u32 %v1272, 7
    %v1274 = vsub.s32 %v1227, %v1273
    %v1275 = vrot.slane %v1165, %v1274
    %v1276 = vlaneseq
    %v1277 = vshrl.u32 %v1276, 7
    %v1278 = vsub.s32 %v1227, %v1277
    %v1279 = vrot.slane %v1168, %v1278
    %v1280 = vlaneseq
    %v1281 = vshrl.u32 %v1280, 7
    %v1282 = vsub.s32 %v1227, %v1281
    %v1283 = vrot.slane %v1171, %v1282
    %v1284 = vlaneseq
    %v1285 = vshrl.u32 %v1284, 7
    %v1286 = vsub.s32 %v1227, %v1285
    %v1287 = vrot.slane %v1174, %v1286
    %v1288 = vlaneseq
    %v1289 = vshrl.u32 %v1288, 7
    %v1290 = vsub.s32 %v1227, %v1289
    %v1291 = vrot.slane %v1177, %v1290
    %v1292 = vlaneseq
    %v1293 = vshrl.u32 %v1292, 7
    %v1294 = vsub.s32 %v1227, %v1293
    %v1295 = vrot.slane %v1180, %v1294
    %v1296 = vlaneseq
    %v1297 = vshrl.u32 %v1296, 7
    %v1298 = vsub.s32 %v1227, %v1297
    %v1299 = vrot.slane %v1183, %v1298
    %v1300 = vlaneseq
    %v1301 = vshrl.u32 %v1300, 7
    %v1302 = vsub.s32 %v1227, %v1301
    %v1303 = vrot.slane %v1186, %v1302
    %v1304 = vlaneseq
    %v1305 = vshrl.u32 %v1304, 7
    %v1306 = vsub.s32 %v1227, %v1305
    %v1307 = vrot.slane %v1189, %v1306
    %v1308 = vlaneseq
    %v1309 = vshrl.u32 %v1308, 7
    %v1310 = vsub.s32 %v1227, %v1309
    %v1311 = vrot.slane %v1192, %v1310
    %v1312 = vlaneseq
    %v1313 = vshrl.u32 %v1312, 7
    %v1314 = vsub.s32 %v1227, %v1313
    %v1315 = vrot.slane %v1195, %v1314
    %v1316 = vlaneseq
    %v1317 = vshrl.u32 %v1316, 7
    %v1318 = vsub.s32 %v1227, %v1317
    %v1319 = vrot.slane %v1198, %v1318
    %v1320 = vlaneseq
    %v1321 = vshrl.u32 %v1320, 7
    %v1322 = vsub.s32 %v1227, %v1321
    %v1323 = vrot.slane %v1201, %v1322
    %v1324 = vlaneseq
    %v1325 = vshrl.u32 %v1324, 7
    %v1326 = vsub.s32 %v1227, %v1325
    %v1327 = vrot.slane %v1204, %v1326
    %v1328 = vlaneseq
    %v1329 = vshrl.u32 %v1328, 7
    %v1330 = vsub.s32 %v1227, %v1329
    %v1331 = vrot.slane %v1207, %v1330
    %v1332 = vlaneseq
    %v1333 = vshrl.u32 %v1332, 7
    %v1334 = vsub.s32 %v1227, %v1333
    %v1335 = vrot.slane %v1210, %v1334
    %v1336 = vlaneseq
    %v1337 = vshrl.u32 %v1336, 7
    %v1338 = vsub.s32 %v1227, %v1337
    %v1339 = vrot.slane %v1213, %v1338
    %v1340 = vlaneseq
    %v1341 = vshrl.u32 %v1340, 7
    %v1342 = vsub.s32 %v1227, %v1341
    %v1343 = vrot.slane %v1216, %v1342
    %v1344 = vlaneseq
    %v1345 = vshrl.u32 %v1344, 7
    %v1346 = vsub.s32 %v1227, %v1345
    %v1347 = vrot.slane %v1219, %v1346
    %v1348 = vlaneseq
    %v1349 = vshrl.u32 %v1348, 7
    %v1350 = vsub.s32 %v1227, %v1349
    %v1351 = vrot.slane %v1222, %v1350
    %v1352 = vlaneseq
    %v1353 = vshrl.u32 %v1352, 7
    %v1354 = vsub.s32 %v1227, %v1353
    %v1355 = vrot.slane %v1225, %v1354
    %vm1356 = vcmask 1041409
    %v1357 = vsel %vm1356, %v1235, %v1231
    %vm1358 = vcmask 1042434
    %v1359 = vsel %vm1358, %v1239, %v1357
    %vm1360 = vcmask 1043459
    %v1361 = vsel %vm1360, %v1243, %v1359
    %vm1362 = vcmask 1044484
    %v1363 = vsel %vm1362, %v1247, %v1361
    %vm1364 = vcmask 1045509
    %v1365 = vsel %vm1364, %v1251, %v1363
    %vm1366 = vcmask 1046534
    %v1367 = vsel %vm1366, %v1255, %v1365
    %vm1368 = vcmask 1047559
    %v1369 = vsel %vm1368, %v1259, %v1367
    %v1370 = vsel %vm1356, %v1267, %v1263
    %v1371 = vsel %vm1358, %v1271, %v1370
    %v1372 = vsel %vm1360, %v1275, %v1371
    %v1373 = vsel %vm1362, %v1279, %v1372
    %v1374 = vsel %vm1364, %v1283, %v1373
    %v1375 = vsel %vm1366, %v1287, %v1374
    %v1376 = vsel %vm1368, %v1291, %v1375
    %v1377 = vsel %vm1356, %v1299, %v1295
    %v1378 = vsel %vm1358, %v1303, %v1377
    %v1379 = vsel %vm1360, %v1307, %v1378
    %v1380 = vsel %vm1362, %v1311, %v1379
    %v1381 = vsel %vm1364, %v1315, %v1380
    %v1382 = vsel %vm1366, %v1319, %v1381
    %v1383 = vsel %vm1368, %v1323, %v1382
    %v1384 = vsel %vm1356, %v1331, %v1327
    %v1385 = vsel %vm1358, %v1335, %v1384
    %v1386 = vsel %vm1360, %v1339, %v1385
    %v1387 = vsel %vm1362, %v1343, %v1386
    %v1388 = vsel %vm1364, %v1347, %v1387
    %v1389 = vsel %vm1366, %v1351, %v1388
    %v1390 = vsel %vm1368, %v1355, %v1389
    %vm1395 = vcmask 64512
    %v1396 = vsel %vm1395, %v1369, -inf
    %1397 = vmax.xlane.f32.xlu0 %v1396
    %v1398 = vpop.xlane.xlu0 %1397
    %v1399 = vsel %vm1395, %v1376, -inf
    %1400 = vmax.xlane.f32.xlu0 %v1399
    %v1401 = vpop.xlane.xlu0 %1400
    %v1402 = vsel %vm1395, %v1383, -inf
    %1403 = vmax.xlane.f32.xlu0 %v1402
    %v1404 = vpop.xlane.xlu0 %1403
    %v1405 = vsel %vm1395, %v1390, -inf
    %1406 = vmax.xlane.f32.xlu0 %v1405
    %v1407 = vpop.xlane.xlu0 %1406
    %v1412 = vlaneseq
    %v1413 = vshrl.u32 %v1412, 7
    %v1414 = vsub.s32 0, %v1413
    %v1415 = vrot.slane %v1398, %v1414
    %v1416 = vlaneseq
    %v1417 = vshrl.u32 %v1416, 7
    %v1418 = vsub.s32 1, %v1417
    %v1419 = vrot.slane %v1398, %v1418
    %v1420 = vlaneseq
    %v1421 = vshrl.u32 %v1420, 7
    %v1422 = vsub.s32 2, %v1421
    %v1423 = vrot.slane %v1398, %v1422
    %v1424 = vlaneseq
    %v1425 = vshrl.u32 %v1424, 7
    %v1426 = vsub.s32 3, %v1425
    %v1427 = vrot.slane %v1398, %v1426
    %v1428 = vlaneseq
    %v1429 = vshrl.u32 %v1428, 7
    %v1430 = vsub.s32 4, %v1429
    %v1431 = vrot.slane %v1398, %v1430
    %v1432 = vlaneseq
    %v1433 = vshrl.u32 %v1432, 7
    %v1434 = vsub.s32 5, %v1433
    %v1435 = vrot.slane %v1398, %v1434
    %v1436 = vlaneseq
    %v1437 = vshrl.u32 %v1436, 7
    %v1438 = vsub.s32 6, %v1437
    %v1439 = vrot.slane %v1398, %v1438
    %v1440 = vlaneseq
    %v1441 = vshrl.u32 %v1440, 7
    %v1442 = vsub.s32 7, %v1441
    %v1443 = vrot.slane %v1398, %v1442
    %v1444 = vlaneseq
    %v1445 = vshrl.u32 %v1444, 7
    %v1446 = vsub.s32 0, %v1445
    %v1447 = vrot.slane %v1401, %v1446
    %v1448 = vlaneseq
    %v1449 = vshrl.u32 %v1448, 7
    %v1450 = vsub.s32 1, %v1449
    %v1451 = vrot.slane %v1401, %v1450
    %v1452 = vlaneseq
    %v1453 = vshrl.u32 %v1452, 7
    %v1454 = vsub.s32 2, %v1453
    %v1455 = vrot.slane %v1401, %v1454
    %v1456 = vlaneseq
    %v1457 = vshrl.u32 %v1456, 7
    %v1458 = vsub.s32 3, %v1457
    %v1459 = vrot.slane %v1401, %v1458
    %v1460 = vlaneseq
    %v1461 = vshrl.u32 %v1460, 7
    %v1462 = vsub.s32 4, %v1461
    %v1463 = vrot.slane %v1401, %v1462
    %v1464 = vlaneseq
    %v1465 = vshrl.u32 %v1464, 7
    %v1466 = vsub.s32 5, %v1465
    %v1467 = vrot.slane %v1401, %v1466
    %v1468 = vlaneseq
    %v1469 = vshrl.u32 %v1468, 7
    %v1470 = vsub.s32 6, %v1469
    %v1471 = vrot.slane %v1401, %v1470
    %v1472 = vlaneseq
    %v1473 = vshrl.u32 %v1472, 7
    %v1474 = vsub.s32 7, %v1473
    %v1475 = vrot.slane %v1401, %v1474
    %v1476 = vlaneseq
    %v1477 = vshrl.u32 %v1476, 7
    %v1478 = vsub.s32 0, %v1477
    %v1479 = vrot.slane %v1404, %v1478
    %v1480 = vlaneseq
    %v1481 = vshrl.u32 %v1480, 7
    %v1482 = vsub.s32 1, %v1481
    %v1483 = vrot.slane %v1404, %v1482
    %v1484 = vlaneseq
    %v1485 = vshrl.u32 %v1484, 7
    %v1486 = vsub.s32 2, %v1485
    %v1487 = vrot.slane %v1404, %v1486
    %v1488 = vlaneseq
    %v1489 = vshrl.u32 %v1488, 7
    %v1490 = vsub.s32 3, %v1489
    %v1491 = vrot.slane %v1404, %v1490
    %v1492 = vlaneseq
    %v1493 = vshrl.u32 %v1492, 7
    %v1494 = vsub.s32 4, %v1493
    %v1495 = vrot.slane %v1404, %v1494
    %v1496 = vlaneseq
    %v1497 = vshrl.u32 %v1496, 7
    %v1498 = vsub.s32 5, %v1497
    %v1499 = vrot.slane %v1404, %v1498
    %v1500 = vlaneseq
    %v1501 = vshrl.u32 %v1500, 7
    %v1502 = vsub.s32 6, %v1501
    %v1503 = vrot.slane %v1404, %v1502
    %v1504 = vlaneseq
    %v1505 = vshrl.u32 %v1504, 7
    %v1506 = vsub.s32 7, %v1505
    %v1507 = vrot.slane %v1404, %v1506
    %v1508 = vlaneseq
    %v1509 = vshrl.u32 %v1508, 7
    %v1510 = vsub.s32 0, %v1509
    %v1511 = vrot.slane %v1407, %v1510
    %v1512 = vlaneseq
    %v1513 = vshrl.u32 %v1512, 7
    %v1514 = vsub.s32 1, %v1513
    %v1515 = vrot.slane %v1407, %v1514
    %v1516 = vlaneseq
    %v1517 = vshrl.u32 %v1516, 7
    %v1518 = vsub.s32 2, %v1517
    %v1519 = vrot.slane %v1407, %v1518
    %v1520 = vlaneseq
    %v1521 = vshrl.u32 %v1520, 7
    %v1522 = vsub.s32 3, %v1521
    %v1523 = vrot.slane %v1407, %v1522
    %v1524 = vlaneseq
    %v1525 = vshrl.u32 %v1524, 7
    %v1526 = vsub.s32 4, %v1525
    %v1527 = vrot.slane %v1407, %v1526
    %v1528 = vlaneseq
    %v1529 = vshrl.u32 %v1528, 7
    %v1530 = vsub.s32 5, %v1529
    %v1531 = vrot.slane %v1407, %v1530
    %v1532 = vlaneseq
    %v1533 = vshrl.u32 %v1532, 7
    %v1534 = vsub.s32 6, %v1533
    %v1535 = vrot.slane %v1407, %v1534
    %v1536 = vlaneseq
    %v1537 = vshrl.u32 %v1536, 7
    %v1538 = vsub.s32 7, %v1537
    %v1539 = vrot.slane %v1407, %v1538
    %v1572 = vsub.f32 %v1066, %v1415
    %v1573 = vsub.f32 %v1067, %v1419
    %v1574 = vsub.f32 %v1068, %v1423
    %v1575 = vsub.f32 %v1069, %v1427
    %v1576 = vsub.f32 %v1070, %v1431
    %v1577 = vsub.f32 %v1071, %v1435
    %v1578 = vsub.f32 %v1072, %v1439
    %v1579 = vsub.f32 %v1073, %v1443
    %v1580 = vsub.f32 %v1074, %v1447
    %v1581 = vsub.f32 %v1075, %v1451
    %v1582 = vsub.f32 %v1076, %v1455
    %v1583 = vsub.f32 %v1077, %v1459
    %v1584 = vsub.f32 %v1078, %v1463
    %v1585 = vsub.f32 %v1079, %v1467
    %v1586 = vsub.f32 %v1080, %v1471
    %v1587 = vsub.f32 %v1081, %v1475
    %v1588 = vsub.f32 %v1082, %v1479
    %v1589 = vsub.f32 %v1083, %v1483
    %v1590 = vsub.f32 %v1084, %v1487
    %v1591 = vsub.f32 %v1085, %v1491
    %v1592 = vsub.f32 %v1086, %v1495
    %v1593 = vsub.f32 %v1087, %v1499
    %v1594 = vsub.f32 %v1088, %v1503
    %v1595 = vsub.f32 %v1089, %v1507
    %v1596 = vsub.f32 %v1090, %v1511
    %v1597 = vsub.f32 %v1091, %v1515
    %v1598 = vsub.f32 %v1092, %v1519
    %v1599 = vsub.f32 %v1093, %v1523
    %v1600 = vsub.f32 %v1094, %v1527
    %v1601 = vsub.f32 %v1095, %v1531
    %v1602 = vsub.f32 %v1096, %v1535
    %v1603 = vsub.f32 %v1097, %v1539
    %v1604 = vmul.f32 %v1572, 1.442695
    %v1605 = vpow.pop %v1604
    %v1606 = vmul.f32 %v1573, 1.442695
    %v1607 = vpow.pop %v1606
    %v1608 = vmul.f32 %v1574, 1.442695
    %v1609 = vpow.pop %v1608
    %v1610 = vmul.f32 %v1575, 1.442695
    %v1611 = vpow.pop %v1610
    %v1612 = vmul.f32 %v1576, 1.442695
    %v1613 = vpow.pop %v1612
    %v1614 = vmul.f32 %v1577, 1.442695
    %v1615 = vpow.pop %v1614
    %v1616 = vmul.f32 %v1578, 1.442695
    %v1617 = vpow.pop %v1616
    %v1618 = vmul.f32 %v1579, 1.442695
    %v1619 = vpow.pop %v1618
    %v1620 = vmul.f32 %v1580, 1.442695
    %v1621 = vpow.pop %v1620
    %v1622 = vmul.f32 %v1581, 1.442695
    %v1623 = vpow.pop %v1622
    %v1624 = vmul.f32 %v1582, 1.442695
    %v1625 = vpow.pop %v1624
    %v1626 = vmul.f32 %v1583, 1.442695
    %v1627 = vpow.pop %v1626
    %v1628 = vmul.f32 %v1584, 1.442695
    %v1629 = vpow.pop %v1628
    %v1630 = vmul.f32 %v1585, 1.442695
    %v1631 = vpow.pop %v1630
    %v1632 = vmul.f32 %v1586, 1.442695
    %v1633 = vpow.pop %v1632
    %v1634 = vmul.f32 %v1587, 1.442695
    %v1635 = vpow.pop %v1634
    %v1636 = vmul.f32 %v1588, 1.442695
    %v1637 = vpow.pop %v1636
    %v1638 = vmul.f32 %v1589, 1.442695
    %v1639 = vpow.pop %v1638
    %v1640 = vmul.f32 %v1590, 1.442695
    %v1641 = vpow.pop %v1640
    %v1642 = vmul.f32 %v1591, 1.442695
    %v1643 = vpow.pop %v1642
    %v1644 = vmul.f32 %v1592, 1.442695
    %v1645 = vpow.pop %v1644
    %v1646 = vmul.f32 %v1593, 1.442695
    %v1647 = vpow.pop %v1646
    %v1648 = vmul.f32 %v1594, 1.442695
    %v1649 = vpow.pop %v1648
    %v1650 = vmul.f32 %v1595, 1.442695
    %v1651 = vpow.pop %v1650
    %v1652 = vmul.f32 %v1596, 1.442695
    %v1653 = vpow.pop %v1652
    %v1654 = vmul.f32 %v1597, 1.442695
    %v1655 = vpow.pop %v1654
    %v1656 = vmul.f32 %v1598, 1.442695
    %v1657 = vpow.pop %v1656
    %v1658 = vmul.f32 %v1599, 1.442695
    %v1659 = vpow.pop %v1658
    %v1660 = vmul.f32 %v1600, 1.442695
    %v1661 = vpow.pop %v1660
    %v1662 = vmul.f32 %v1601, 1.442695
    %v1663 = vpow.pop %v1662
    %v1664 = vmul.f32 %v1602, 1.442695
    %v1665 = vpow.pop %v1664
    %v1666 = vmul.f32 %v1603, 1.442695
    %v1667 = vpow.pop %v1666
    %1700 = vset.pattern.permute.xlu0 0
    %1701 = vperm.xlu0 %1700, %v1605
    %v1702 = vpop.permute.xlu0 %1701
    %1703 = vset.pattern.permute.xlu0 0
    %1704 = vperm.xlu0 %1703, %v1607
    %v1705 = vpop.permute.xlu0 %1704
    %1706 = vset.pattern.permute.xlu0 0
    %1707 = vperm.xlu0 %1706, %v1609
    %v1708 = vpop.permute.xlu0 %1707
    %1709 = vset.pattern.permute.xlu0 0
    %1710 = vperm.xlu0 %1709, %v1611
    %v1711 = vpop.permute.xlu0 %1710
    %1712 = vset.pattern.permute.xlu0 0
    %1713 = vperm.xlu0 %1712, %v1613
    %v1714 = vpop.permute.xlu0 %1713
    %1715 = vset.pattern.permute.xlu0 0
    %1716 = vperm.xlu0 %1715, %v1615
    %v1717 = vpop.permute.xlu0 %1716
    %1718 = vset.pattern.permute.xlu0 0
    %1719 = vperm.xlu0 %1718, %v1617
    %v1720 = vpop.permute.xlu0 %1719
    %1721 = vset.pattern.permute.xlu0 0
    %1722 = vperm.xlu0 %1721, %v1619
    %v1723 = vpop.permute.xlu0 %1722
    %1724 = vset.pattern.permute.xlu0 0
    %1725 = vperm.xlu0 %1724, %v1621
    %v1726 = vpop.permute.xlu0 %1725
    %1727 = vset.pattern.permute.xlu0 0
    %1728 = vperm.xlu0 %1727, %v1623
    %v1729 = vpop.permute.xlu0 %1728
    %1730 = vset.pattern.permute.xlu0 0
    %1731 = vperm.xlu0 %1730, %v1625
    %v1732 = vpop.permute.xlu0 %1731
    %1733 = vset.pattern.permute.xlu0 0
    %1734 = vperm.xlu0 %1733, %v1627
    %v1735 = vpop.permute.xlu0 %1734
    %1736 = vset.pattern.permute.xlu0 0
    %1737 = vperm.xlu0 %1736, %v1629
    %v1738 = vpop.permute.xlu0 %1737
    %1739 = vset.pattern.permute.xlu0 0
    %1740 = vperm.xlu0 %1739, %v1631
    %v1741 = vpop.permute.xlu0 %1740
    %1742 = vset.pattern.permute.xlu0 0
    %1743 = vperm.xlu0 %1742, %v1633
    %v1744 = vpop.permute.xlu0 %1743
    %1745 = vset.pattern.permute.xlu0 0
    %1746 = vperm.xlu0 %1745, %v1635
    %v1747 = vpop.permute.xlu0 %1746
    %1748 = vset.pattern.permute.xlu0 0
    %1749 = vperm.xlu0 %1748, %v1637
    %v1750 = vpop.permute.xlu0 %1749
    %1751 = vset.pattern.permute.xlu0 0
    %1752 = vperm.xlu0 %1751, %v1639
    %v1753 = vpop.permute.xlu0 %1752
    %1754 = vset.pattern.permute.xlu0 0
    %1755 = vperm.xlu0 %1754, %v1641
    %v1756 = vpop.permute.xlu0 %1755
    %1757 = vset.pattern.permute.xlu0 0
    %1758 = vperm.xlu0 %1757, %v1643
    %v1759 = vpop.permute.xlu0 %1758
    %1760 = vset.pattern.permute.xlu0 0
    %1761 = vperm.xlu0 %1760, %v1645
    %v1762 = vpop.permute.xlu0 %1761
    %1763 = vset.pattern.permute.xlu0 0
    %1764 = vperm.xlu0 %1763, %v1647
    %v1765 = vpop.permute.xlu0 %1764
    %1766 = vset.pattern.permute.xlu0 0
    %1767 = vperm.xlu0 %1766, %v1649
    %v1768 = vpop.permute.xlu0 %1767
    %1769 = vset.pattern.permute.xlu0 0
    %1770 = vperm.xlu0 %1769, %v1651
    %v1771 = vpop.permute.xlu0 %1770
    %1772 = vset.pattern.permute.xlu0 0
    %1773 = vperm.xlu0 %1772, %v1653
    %v1774 = vpop.permute.xlu0 %1773
    %1775 = vset.pattern.permute.xlu0 0
    %1776 = vperm.xlu0 %1775, %v1655
    %v1777 = vpop.permute.xlu0 %1776
    %1778 = vset.pattern.permute.xlu0 0
    %1779 = vperm.xlu0 %1778, %v1657
    %v1780 = vpop.permute.xlu0 %1779
    %1781 = vset.pattern.permute.xlu0 0
    %1782 = vperm.xlu0 %1781, %v1659
    %v1783 = vpop.permute.xlu0 %1782
    %1784 = vset.pattern.permute.xlu0 0
    %1785 = vperm.xlu0 %1784, %v1661
    %v1786 = vpop.permute.xlu0 %1785
    %1787 = vset.pattern.permute.xlu0 0
    %1788 = vperm.xlu0 %1787, %v1663
    %v1789 = vpop.permute.xlu0 %1788
    %1790 = vset.pattern.permute.xlu0 0
    %1791 = vperm.xlu0 %1790, %v1665
    %v1792 = vpop.permute.xlu0 %1791
    %1793 = vset.pattern.permute.xlu0 0
    %1794 = vperm.xlu0 %1793, %v1667
    %v1795 = vpop.permute.xlu0 %1794
    %v1796 = vlaneseq
    %v1797 = vshrl.u32 %v1796, 7
    %v1798 = vsub.s32 %v1227, %v1797
    %v1799 = vrot.slane %v1702, %v1798
    %v1800 = vlaneseq
    %v1801 = vshrl.u32 %v1800, 7
    %v1802 = vsub.s32 %v1227, %v1801
    %v1803 = vrot.slane %v1705, %v1802
    %v1804 = vlaneseq
    %v1805 = vshrl.u32 %v1804, 7
    %v1806 = vsub.s32 %v1227, %v1805
    %v1807 = vrot.slane %v1708, %v1806
    %v1808 = vlaneseq
    %v1809 = vshrl.u32 %v1808, 7
    %v1810 = vsub.s32 %v1227, %v1809
    %v1811 = vrot.slane %v1711, %v1810
    %v1812 = vlaneseq
    %v1813 = vshrl.u32 %v1812, 7
    %v1814 = vsub.s32 %v1227, %v1813
    %v1815 = vrot.slane %v1714, %v1814
    %v1816 = vlaneseq
    %v1817 = vshrl.u32 %v1816, 7
    %v1818 = vsub.s32 %v1227, %v1817
    %v1819 = vrot.slane %v1717, %v1818
    %v1820 = vlaneseq
    %v1821 = vshrl.u32 %v1820, 7
    %v1822 = vsub.s32 %v1227, %v1821
    %v1823 = vrot.slane %v1720, %v1822
    %v1824 = vlaneseq
    %v1825 = vshrl.u32 %v1824, 7
    %v1826 = vsub.s32 %v1227, %v1825
    %v1827 = vrot.slane %v1723, %v1826
    %v1828 = vlaneseq
    %v1829 = vshrl.u32 %v1828, 7
    %v1830 = vsub.s32 %v1227, %v1829
    %v1831 = vrot.slane %v1726, %v1830
    %v1832 = vlaneseq
    %v1833 = vshrl.u32 %v1832, 7
    %v1834 = vsub.s32 %v1227, %v1833
    %v1835 = vrot.slane %v1729, %v1834
    %v1836 = vlaneseq
    %v1837 = vshrl.u32 %v1836, 7
    %v1838 = vsub.s32 %v1227, %v1837
    %v1839 = vrot.slane %v1732, %v1838
    %v1840 = vlaneseq
    %v1841 = vshrl.u32 %v1840, 7
    %v1842 = vsub.s32 %v1227, %v1841
    %v1843 = vrot.slane %v1735, %v1842
    %v1844 = vlaneseq
    %v1845 = vshrl.u32 %v1844, 7
    %v1846 = vsub.s32 %v1227, %v1845
    %v1847 = vrot.slane %v1738, %v1846
    %v1848 = vlaneseq
    %v1849 = vshrl.u32 %v1848, 7
    %v1850 = vsub.s32 %v1227, %v1849
    %v1851 = vrot.slane %v1741, %v1850
    %v1852 = vlaneseq
    %v1853 = vshrl.u32 %v1852, 7
    %v1854 = vsub.s32 %v1227, %v1853
    %v1855 = vrot.slane %v1744, %v1854
    %v1856 = vlaneseq
    %v1857 = vshrl.u32 %v1856, 7
    %v1858 = vsub.s32 %v1227, %v1857
    %v1859 = vrot.slane %v1747, %v1858
    %v1860 = vlaneseq
    %v1861 = vshrl.u32 %v1860, 7
    %v1862 = vsub.s32 %v1227, %v1861
    %v1863 = vrot.slane %v1750, %v1862
    %v1864 = vlaneseq
    %v1865 = vshrl.u32 %v1864, 7
    %v1866 = vsub.s32 %v1227, %v1865
    %v1867 = vrot.slane %v1753, %v1866
    %v1868 = vlaneseq
    %v1869 = vshrl.u32 %v1868, 7
    %v1870 = vsub.s32 %v1227, %v1869
    %v1871 = vrot.slane %v1756, %v1870
    %v1872 = vlaneseq
    %v1873 = vshrl.u32 %v1872, 7
    %v1874 = vsub.s32 %v1227, %v1873
    %v1875 = vrot.slane %v1759, %v1874
    %v1876 = vlaneseq
    %v1877 = vshrl.u32 %v1876, 7
    %v1878 = vsub.s32 %v1227, %v1877
    %v1879 = vrot.slane %v1762, %v1878
    %v1880 = vlaneseq
    %v1881 = vshrl.u32 %v1880, 7
    %v1882 = vsub.s32 %v1227, %v1881
    %v1883 = vrot.slane %v1765, %v1882
    %v1884 = vlaneseq
    %v1885 = vshrl.u32 %v1884, 7
    %v1886 = vsub.s32 %v1227, %v1885
    %v1887 = vrot.slane %v1768, %v1886
    %v1888 = vlaneseq
    %v1889 = vshrl.u32 %v1888, 7
    %v1890 = vsub.s32 %v1227, %v1889
    %v1891 = vrot.slane %v1771, %v1890
    %v1892 = vlaneseq
    %v1893 = vshrl.u32 %v1892, 7
    %v1894 = vsub.s32 %v1227, %v1893
    %v1895 = vrot.slane %v1774, %v1894
    %v1896 = vlaneseq
    %v1897 = vshrl.u32 %v1896, 7
    %v1898 = vsub.s32 %v1227, %v1897
    %v1899 = vrot.slane %v1777, %v1898
    %v1900 = vlaneseq
    %v1901 = vshrl.u32 %v1900, 7
    %v1902 = vsub.s32 %v1227, %v1901
    %v1903 = vrot.slane %v1780, %v1902
    %v1904 = vlaneseq
    %v1905 = vshrl.u32 %v1904, 7
    %v1906 = vsub.s32 %v1227, %v1905
    %v1907 = vrot.slane %v1783, %v1906
    %v1908 = vlaneseq
    %v1909 = vshrl.u32 %v1908, 7
    %v1910 = vsub.s32 %v1227, %v1909
    %v1911 = vrot.slane %v1786, %v1910
    %v1912 = vlaneseq
    %v1913 = vshrl.u32 %v1912, 7
    %v1914 = vsub.s32 %v1227, %v1913
    %v1915 = vrot.slane %v1789, %v1914
    %v1916 = vlaneseq
    %v1917 = vshrl.u32 %v1916, 7
    %v1918 = vsub.s32 %v1227, %v1917
    %v1919 = vrot.slane %v1792, %v1918
    %v1920 = vlaneseq
    %v1921 = vshrl.u32 %v1920, 7
    %v1922 = vsub.s32 %v1227, %v1921
    %v1923 = vrot.slane %v1795, %v1922
    %v1924 = vsel %vm1356, %v1803, %v1799
    %v1925 = vsel %vm1358, %v1807, %v1924
    %v1926 = vsel %vm1360, %v1811, %v1925
    %v1927 = vsel %vm1362, %v1815, %v1926
    %v1928 = vsel %vm1364, %v1819, %v1927
    %v1929 = vsel %vm1366, %v1823, %v1928
    %v1930 = vsel %vm1368, %v1827, %v1929
    %v1931 = vsel %vm1356, %v1835, %v1831
    %v1932 = vsel %vm1358, %v1839, %v1931
    %v1933 = vsel %vm1360, %v1843, %v1932
    %v1934 = vsel %vm1362, %v1847, %v1933
    %v1935 = vsel %vm1364, %v1851, %v1934
    %v1936 = vsel %vm1366, %v1855, %v1935
    %v1937 = vsel %vm1368, %v1859, %v1936
    %v1938 = vsel %vm1356, %v1867, %v1863
    %v1939 = vsel %vm1358, %v1871, %v1938
    %v1940 = vsel %vm1360, %v1875, %v1939
    %v1941 = vsel %vm1362, %v1879, %v1940
    %v1942 = vsel %vm1364, %v1883, %v1941
    %v1943 = vsel %vm1366, %v1887, %v1942
    %v1944 = vsel %vm1368, %v1891, %v1943
    %v1945 = vsel %vm1356, %v1899, %v1895
    %v1946 = vsel %vm1358, %v1903, %v1945
    %v1947 = vsel %vm1360, %v1907, %v1946
    %v1948 = vsel %vm1362, %v1911, %v1947
    %v1949 = vsel %vm1364, %v1915, %v1948
    %v1950 = vsel %vm1366, %v1919, %v1949
    %v1951 = vsel %vm1368, %v1923, %v1950
    %v1956 = vsel %vm1395, %v1930, 0.0
    %1957 = vadd.xlane.f32.xlu0 %v1956
    %v1958 = vpop.xlane.xlu0 %1957
    %v1959 = vsel %vm1395, %v1937, 0.0
    %1960 = vadd.xlane.f32.xlu0 %v1959
    %v1961 = vpop.xlane.xlu0 %1960
    %v1962 = vsel %vm1395, %v1944, 0.0
    %1963 = vadd.xlane.f32.xlu0 %v1962
    %v1964 = vpop.xlane.xlu0 %1963
    %v1965 = vsel %vm1395, %v1951, 0.0
    %1966 = vadd.xlane.f32.xlu0 %v1965
    %v1967 = vpop.xlane.xlu0 %1966
    %v1968 = vrcp.pop %v1958
    %v1969 = vrcp.pop %v1961
    %v1970 = vrcp.pop %v1964
    %v1971 = vrcp.pop %v1967
    %v1976 = vlaneseq
    %v1977 = vshrl.u32 %v1976, 7
    %v1978 = vsub.s32 0, %v1977
    %v1979 = vrot.slane %v1968, %v1978
    %v1980 = vlaneseq
    %v1981 = vshrl.u32 %v1980, 7
    %v1982 = vsub.s32 1, %v1981
    %v1983 = vrot.slane %v1968, %v1982
    %v1984 = vlaneseq
    %v1985 = vshrl.u32 %v1984, 7
    %v1986 = vsub.s32 2, %v1985
    %v1987 = vrot.slane %v1968, %v1986
    %v1988 = vlaneseq
    %v1989 = vshrl.u32 %v1988, 7
    %v1990 = vsub.s32 3, %v1989
    %v1991 = vrot.slane %v1968, %v1990
    %v1992 = vlaneseq
    %v1993 = vshrl.u32 %v1992, 7
    %v1994 = vsub.s32 4, %v1993
    %v1995 = vrot.slane %v1968, %v1994
    %v1996 = vlaneseq
    %v1997 = vshrl.u32 %v1996, 7
    %v1998 = vsub.s32 5, %v1997
    %v1999 = vrot.slane %v1968, %v1998
    %v2000 = vlaneseq
    %v2001 = vshrl.u32 %v2000, 7
    %v2002 = vsub.s32 6, %v2001
    %v2003 = vrot.slane %v1968, %v2002
    %v2004 = vlaneseq
    %v2005 = vshrl.u32 %v2004, 7
    %v2006 = vsub.s32 7, %v2005
    %v2007 = vrot.slane %v1968, %v2006
    %v2008 = vlaneseq
    %v2009 = vshrl.u32 %v2008, 7
    %v2010 = vsub.s32 0, %v2009
    %v2011 = vrot.slane %v1969, %v2010
    %v2012 = vlaneseq
    %v2013 = vshrl.u32 %v2012, 7
    %v2014 = vsub.s32 1, %v2013
    %v2015 = vrot.slane %v1969, %v2014
    %v2016 = vlaneseq
    %v2017 = vshrl.u32 %v2016, 7
    %v2018 = vsub.s32 2, %v2017
    %v2019 = vrot.slane %v1969, %v2018
    %v2020 = vlaneseq
    %v2021 = vshrl.u32 %v2020, 7
    %v2022 = vsub.s32 3, %v2021
    %v2023 = vrot.slane %v1969, %v2022
    %v2024 = vlaneseq
    %v2025 = vshrl.u32 %v2024, 7
    %v2026 = vsub.s32 4, %v2025
    %v2027 = vrot.slane %v1969, %v2026
    %v2028 = vlaneseq
    %v2029 = vshrl.u32 %v2028, 7
    %v2030 = vsub.s32 5, %v2029
    %v2031 = vrot.slane %v1969, %v2030
    %v2032 = vlaneseq
    %v2033 = vshrl.u32 %v2032, 7
    %v2034 = vsub.s32 6, %v2033
    %v2035 = vrot.slane %v1969, %v2034
    %v2036 = vlaneseq
    %v2037 = vshrl.u32 %v2036, 7
    %v2038 = vsub.s32 7, %v2037
    %v2039 = vrot.slane %v1969, %v2038
    %v2040 = vlaneseq
    %v2041 = vshrl.u32 %v2040, 7
    %v2042 = vsub.s32 0, %v2041
    %v2043 = vrot.slane %v1970, %v2042
    %v2044 = vlaneseq
    %v2045 = vshrl.u32 %v2044, 7
    %v2046 = vsub.s32 1, %v2045
    %v2047 = vrot.slane %v1970, %v2046
    %v2048 = vlaneseq
    %v2049 = vshrl.u32 %v2048, 7
    %v2050 = vsub.s32 2, %v2049
    %v2051 = vrot.slane %v1970, %v2050
    %v2052 = vlaneseq
    %v2053 = vshrl.u32 %v2052, 7
    %v2054 = vsub.s32 3, %v2053
    %v2055 = vrot.slane %v1970, %v2054
    %v2056 = vlaneseq
    %v2057 = vshrl.u32 %v2056, 7
    %v2058 = vsub.s32 4, %v2057
    %v2059 = vrot.slane %v1970, %v2058
    %v2060 = vlaneseq
    %v2061 = vshrl.u32 %v2060, 7
    %v2062 = vsub.s32 5, %v2061
    %v2063 = vrot.slane %v1970, %v2062
    %v2064 = vlaneseq
    %v2065 = vshrl.u32 %v2064, 7
    %v2066 = vsub.s32 6, %v2065
    %v2067 = vrot.slane %v1970, %v2066
    %v2068 = vlaneseq
    %v2069 = vshrl.u32 %v2068, 7
    %v2070 = vsub.s32 7, %v2069
    %v2071 = vrot.slane %v1970, %v2070
    %v2072 = vlaneseq
    %v2073 = vshrl.u32 %v2072, 7
    %v2074 = vsub.s32 0, %v2073
    %v2075 = vrot.slane %v1971, %v2074
    %v2076 = vlaneseq
    %v2077 = vshrl.u32 %v2076, 7
    %v2078 = vsub.s32 1, %v2077
    %v2079 = vrot.slane %v1971, %v2078
    %v2080 = vlaneseq
    %v2081 = vshrl.u32 %v2080, 7
    %v2082 = vsub.s32 2, %v2081
    %v2083 = vrot.slane %v1971, %v2082
    %v2084 = vlaneseq
    %v2085 = vshrl.u32 %v2084, 7
    %v2086 = vsub.s32 3, %v2085
    %v2087 = vrot.slane %v1971, %v2086
    %v2088 = vlaneseq
    %v2089 = vshrl.u32 %v2088, 7
    %v2090 = vsub.s32 4, %v2089
    %v2091 = vrot.slane %v1971, %v2090
    %v2092 = vlaneseq
    %v2093 = vshrl.u32 %v2092, 7
    %v2094 = vsub.s32 5, %v2093
    %v2095 = vrot.slane %v1971, %v2094
    %v2096 = vlaneseq
    %v2097 = vshrl.u32 %v2096, 7
    %v2098 = vsub.s32 6, %v2097
    %v2099 = vrot.slane %v1971, %v2098
    %v2100 = vlaneseq
    %v2101 = vshrl.u32 %v2100, 7
    %v2102 = vsub.s32 7, %v2101
    %v2103 = vrot.slane %v1971, %v2102
    %v2136 = vmul.f32 %v1605, %v1979
    %v2137 = vmul.f32 %v1607, %v1983
    %v2138 = vmul.f32 %v1609, %v1987
    %v2139 = vmul.f32 %v1611, %v1991
    %v2140 = vmul.f32 %v1613, %v1995
    %v2141 = vmul.f32 %v1615, %v1999
    %v2142 = vmul.f32 %v1617, %v2003
    %v2143 = vmul.f32 %v1619, %v2007
    %v2144 = vmul.f32 %v1621, %v2011
    %v2145 = vmul.f32 %v1623, %v2015
    %v2146 = vmul.f32 %v1625, %v2019
    %v2147 = vmul.f32 %v1627, %v2023
    %v2148 = vmul.f32 %v1629, %v2027
    %v2149 = vmul.f32 %v1631, %v2031
    %v2150 = vmul.f32 %v1633, %v2035
    %v2151 = vmul.f32 %v1635, %v2039
    %v2152 = vmul.f32 %v1637, %v2043
    %v2153 = vmul.f32 %v1639, %v2047
    %v2154 = vmul.f32 %v1641, %v2051
    %v2155 = vmul.f32 %v1643, %v2055
    %v2156 = vmul.f32 %v1645, %v2059
    %v2157 = vmul.f32 %v1647, %v2063
    %v2158 = vmul.f32 %v1649, %v2067
    %v2159 = vmul.f32 %v1651, %v2071
    %v2160 = vmul.f32 %v1653, %v2075
    %v2161 = vmul.f32 %v1655, %v2079
    %v2162 = vmul.f32 %v1657, %v2083
    %v2163 = vmul.f32 %v1659, %v2087
    %v2164 = vmul.f32 %v1661, %v2091
    %v2165 = vmul.f32 %v1663, %v2095
    %v2166 = vmul.f32 %v1665, %v2099
    %v2167 = vmul.f32 %v1667, %v2103
    %v2168 = vlaneseq
    %v2169 = vshrl.u32 %v2168, 7
    %v2170 = vsub.s32 2, %v2169
    %v2171 = vrot.slane %v74, %v2170
    %2180 = vset.pattern.permute.xlu0 0
    %2181 = vperm.xlu0 %2180, %v2136
    %v2182 = vpop.permute.xlu0 %2181
    %2183 = vset.pattern.permute.xlu0 0
    %2184 = vperm.xlu0 %2183, %v2137
    %v2185 = vpop.permute.xlu0 %2184
    %2186 = vset.pattern.permute.xlu0 0
    %2187 = vperm.xlu0 %2186, %v2138
    %v2188 = vpop.permute.xlu0 %2187
    %2189 = vset.pattern.permute.xlu0 0
    %2190 = vperm.xlu0 %2189, %v2139
    %v2191 = vpop.permute.xlu0 %2190
    %2192 = vset.pattern.permute.xlu0 0
    %2193 = vperm.xlu0 %2192, %v2140
    %v2194 = vpop.permute.xlu0 %2193
    %2195 = vset.pattern.permute.xlu0 0
    %2196 = vperm.xlu0 %2195, %v2141
    %v2197 = vpop.permute.xlu0 %2196
    %2198 = vset.pattern.permute.xlu0 0
    %2199 = vperm.xlu0 %2198, %v2142
    %v2200 = vpop.permute.xlu0 %2199
    %2201 = vset.pattern.permute.xlu0 0
    %2202 = vperm.xlu0 %2201, %v2143
    %v2203 = vpop.permute.xlu0 %2202
    %v2204 = vlaneseq
    %v2205 = vshrl.u32 %v2204, 7
    %v2206 = vsub.s32 %v1227, %v2205
    %v2207 = vrot.slane %v2182, %v2206
    %v2208 = vlaneseq
    %v2209 = vshrl.u32 %v2208, 7
    %v2210 = vsub.s32 %v1227, %v2209
    %v2211 = vrot.slane %v2185, %v2210
    %v2212 = vlaneseq
    %v2213 = vshrl.u32 %v2212, 7
    %v2214 = vsub.s32 %v1227, %v2213
    %v2215 = vrot.slane %v2188, %v2214
    %v2216 = vlaneseq
    %v2217 = vshrl.u32 %v2216, 7
    %v2218 = vsub.s32 %v1227, %v2217
    %v2219 = vrot.slane %v2191, %v2218
    %v2220 = vlaneseq
    %v2221 = vshrl.u32 %v2220, 7
    %v2222 = vsub.s32 %v1227, %v2221
    %v2223 = vrot.slane %v2194, %v2222
    %v2224 = vlaneseq
    %v2225 = vshrl.u32 %v2224, 7
    %v2226 = vsub.s32 %v1227, %v2225
    %v2227 = vrot.slane %v2197, %v2226
    %v2228 = vlaneseq
    %v2229 = vshrl.u32 %v2228, 7
    %v2230 = vsub.s32 %v1227, %v2229
    %v2231 = vrot.slane %v2200, %v2230
    %v2232 = vlaneseq
    %v2233 = vshrl.u32 %v2232, 7
    %v2234 = vsub.s32 %v1227, %v2233
    %v2235 = vrot.slane %v2203, %v2234
    %v2236 = vsel %vm1356, %v2211, %v2207
    %v2237 = vsel %vm1358, %v2215, %v2236
    %v2238 = vsel %vm1360, %v2219, %v2237
    %v2239 = vsel %vm1362, %v2223, %v2238
    %v2240 = vsel %vm1364, %v2227, %v2239
    %v2241 = vsel %vm1366, %v2231, %v2240
    %v2242 = vsel %vm1368, %v2235, %v2241
    %v2243 = vsel %vm1395, %v2242, 0
    %2245 = vmatprep.subr.mxu0 0.0
    %2246 = vmatpush1.msra.mxu0 0.0
    %2247 = vmatprep.subr.mxu0 0.0
    %2248 = vmatpush1.msra.mxu0 0.0
    %2249 = vmatprep.subr.mxu0 0.0
    %2250 = vmatpush1.msra.mxu0 0.0
    %2251 = vmatprep.subr.mxu0 0.0
    %2252 = vmatpush1.msra.mxu0 0.0
    %2253 = vmatprep.subr.mxu0 0.0
    %2254 = vmatpush1.msra.mxu0 0.0
    %2255 = vmatprep.subr.mxu0 0.0
    %2256 = vmatpush1.msra.mxu0 0.0
    %2257 = vmatprep.subr.mxu0 0.0
    %2258 = vmatpush1.msra.mxu0 0.0
    %2259 = vmatprep.subr.mxu0 0.0
    %2260 = vmatpush1.msra.mxu0 0.0
    %2261 = vmatprep.subr.mxu0 0.0
    %2262 = vmatpush1.msra.mxu0 0.0
    %2263 = vmatprep.subr.mxu0 0.0
    %2264 = vmatpush1.msra.mxu0 0.0
    %2265 = vmatprep.subr.mxu0 0.0
    %2266 = vmatpush1.msra.mxu0 0.0
    %2267 = vmatprep.subr.mxu0 0.0
    %2268 = vmatpush1.msra.mxu0 0.0
    %2269 = vmatprep.subr.mxu0 0.0
    %2270 = vmatpush1.msra.mxu0 0.0
    %2271 = vmatprep.subr.mxu0 0.0
    %2272 = vmatpush1.msra.mxu0 0.0
    %2273 = vmatprep.subr.mxu0 0.0
    %2274 = vmatpush1.msra.mxu0 0.0
    %2275 = vmatprep.subr.mxu0 0.0
    %2276 = vmatpush1.msra.mxu0 %v204
    %2277 = vmatprep.subr.mxu0 0.0
    %2278 = vmatpush2.msra.mxu0 0.0
    %2279 = vmatprep.subr.mxu0 0.0
    %2280 = vmatpush2.msra.mxu0 0.0
    %2281 = vmatprep.subr.mxu0 0.0
    %2282 = vmatpush2.msra.mxu0 0.0
    %2283 = vmatprep.subr.mxu0 0.0
    %2284 = vmatpush2.msra.mxu0 0.0
    %2285 = vmatprep.subr.mxu0 0.0
    %2286 = vmatpush2.msra.mxu0 0.0
    %2287 = vmatprep.subr.mxu0 0.0
    %2288 = vmatpush2.msra.mxu0 0.0
    %2289 = vmatprep.subr.mxu0 0.0
    %2290 = vmatpush2.msra.mxu0 0.0
    %2291 = vmatprep.subr.mxu0 0.0
    %2292 = vmatpush2.msra.mxu0 0.0
    %2293 = vmatprep.subr.mxu0 0.0
    %2294 = vmatpush2.msra.mxu0 0.0
    %2295 = vmatprep.subr.mxu0 0.0
    %2296 = vmatpush2.msra.mxu0 0.0
    %2297 = vmatprep.subr.mxu0 0.0
    %2298 = vmatpush2.msra.mxu0 0.0
    %2299 = vmatprep.subr.mxu0 0.0
    %2300 = vmatpush2.msra.mxu0 0.0
    %2301 = vmatprep.subr.mxu0 0.0
    %2302 = vmatpush2.msra.mxu0 0.0
    %2303 = vmatprep.subr.mxu0 0.0
    %2304 = vmatpush2.msra.mxu0 0.0
    %2305 = vmatprep.subr.mxu0 0.0
    %2306 = vmatpush2.msra.mxu0 0.0
    %2307 = vmatprep.subr.mxu0 0.0
    %2308 = vmatpush2.msra.mxu0 0.0
    %2309 = vmatprep.mubr.f32.mxu0 0.0
    %2310 = vmatmul.mubr.f32.gmra.mxu0 %v2243
    %v2311 = vpop.f32.mrf.mxu0
    %v2312 = vadd.f32 %v2171, %v2311
    %v2313 = vpop.f32.mrf.mxu0
    %2314 = vdwg.mxu0
    %2323 = vset.pattern.permute.xlu0 0
    %2324 = vperm.xlu0 %2323, %v2144
    %v2325 = vpop.permute.xlu0 %2324
    %2326 = vset.pattern.permute.xlu0 0
    %2327 = vperm.xlu0 %2326, %v2145
    %v2328 = vpop.permute.xlu0 %2327
    %2329 = vset.pattern.permute.xlu0 0
    %2330 = vperm.xlu0 %2329, %v2146
    %v2331 = vpop.permute.xlu0 %2330
    %2332 = vset.pattern.permute.xlu0 0
    %2333 = vperm.xlu0 %2332, %v2147
    %v2334 = vpop.permute.xlu0 %2333
    %2335 = vset.pattern.permute.xlu0 0
    %2336 = vperm.xlu0 %2335, %v2148
    %v2337 = vpop.permute.xlu0 %2336
    %2338 = vset.pattern.permute.xlu0 0
    %2339 = vperm.xlu0 %2338, %v2149
    %v2340 = vpop.permute.xlu0 %2339
    %2341 = vset.pattern.permute.xlu0 0
    %2342 = vperm.xlu0 %2341, %v2150
    %v2343 = vpop.permute.xlu0 %2342
    %2344 = vset.pattern.permute.xlu0 0
    %2345 = vperm.xlu0 %2344, %v2151
    %v2346 = vpop.permute.xlu0 %2345
    %v2347 = vlaneseq
    %v2348 = vshrl.u32 %v2347, 7
    %v2349 = vsub.s32 %v1227, %v2348
    %v2350 = vrot.slane %v2325, %v2349
    %v2351 = vlaneseq
    %v2352 = vshrl.u32 %v2351, 7
    %v2353 = vsub.s32 %v1227, %v2352
    %v2354 = vrot.slane %v2328, %v2353
    %v2355 = vlaneseq
    %v2356 = vshrl.u32 %v2355, 7
    %v2357 = vsub.s32 %v1227, %v2356
    %v2358 = vrot.slane %v2331, %v2357
    %v2359 = vlaneseq
    %v2360 = vshrl.u32 %v2359, 7
    %v2361 = vsub.s32 %v1227, %v2360
    %v2362 = vrot.slane %v2334, %v2361
    %v2363 = vlaneseq
    %v2364 = vshrl.u32 %v2363, 7
    %v2365 = vsub.s32 %v1227, %v2364
    %v2366 = vrot.slane %v2337, %v2365
    %v2367 = vlaneseq
    %v2368 = vshrl.u32 %v2367, 7
    %v2369 = vsub.s32 %v1227, %v2368
    %v2370 = vrot.slane %v2340, %v2369
    %v2371 = vlaneseq
    %v2372 = vshrl.u32 %v2371, 7
    %v2373 = vsub.s32 %v1227, %v2372
    %v2374 = vrot.slane %v2343, %v2373
    %v2375 = vlaneseq
    %v2376 = vshrl.u32 %v2375, 7
    %v2377 = vsub.s32 %v1227, %v2376
    %v2378 = vrot.slane %v2346, %v2377
    %v2379 = vsel %vm1356, %v2354, %v2350
    %v2380 = vsel %vm1358, %v2358, %v2379
    %v2381 = vsel %vm1360, %v2362, %v2380
    %v2382 = vsel %vm1362, %v2366, %v2381
    %v2383 = vsel %vm1364, %v2370, %v2382
    %v2384 = vsel %vm1366, %v2374, %v2383
    %v2385 = vsel %vm1368, %v2378, %v2384
    %v2386 = vsel %vm1395, %v2385, 0
    %2388 = vmatprep.subr.mxu0 0.0
    %2389 = vmatpush1.msra.mxu0 0.0
    %2390 = vmatprep.subr.mxu0 0.0
    %2391 = vmatpush1.msra.mxu0 0.0
    %2392 = vmatprep.subr.mxu0 0.0
    %2393 = vmatpush1.msra.mxu0 0.0
    %2394 = vmatprep.subr.mxu0 0.0
    %2395 = vmatpush1.msra.mxu0 0.0
    %2396 = vmatprep.subr.mxu0 0.0
    %2397 = vmatpush1.msra.mxu0 0.0
    %2398 = vmatprep.subr.mxu0 0.0
    %2399 = vmatpush1.msra.mxu0 0.0
    %2400 = vmatprep.subr.mxu0 0.0
    %2401 = vmatpush1.msra.mxu0 0.0
    %2402 = vmatprep.subr.mxu0 0.0
    %2403 = vmatpush1.msra.mxu0 0.0
    %2404 = vmatprep.subr.mxu0 0.0
    %2405 = vmatpush1.msra.mxu0 0.0
    %2406 = vmatprep.subr.mxu0 0.0
    %2407 = vmatpush1.msra.mxu0 0.0
    %2408 = vmatprep.subr.mxu0 0.0
    %2409 = vmatpush1.msra.mxu0 0.0
    %2410 = vmatprep.subr.mxu0 0.0
    %2411 = vmatpush1.msra.mxu0 0.0
    %2412 = vmatprep.subr.mxu0 0.0
    %2413 = vmatpush1.msra.mxu0 0.0
    %2414 = vmatprep.subr.mxu0 0.0
    %2415 = vmatpush1.msra.mxu0 0.0
    %2416 = vmatprep.subr.mxu0 0.0
    %2417 = vmatpush1.msra.mxu0 0.0
    %2418 = vmatprep.subr.mxu0 0.0
    %2419 = vmatpush1.msra.mxu0 %v207
    %2420 = vmatprep.subr.mxu0 0.0
    %2421 = vmatpush2.msra.mxu0 0.0
    %2422 = vmatprep.subr.mxu0 0.0
    %2423 = vmatpush2.msra.mxu0 0.0
    %2424 = vmatprep.subr.mxu0 0.0
    %2425 = vmatpush2.msra.mxu0 0.0
    %2426 = vmatprep.subr.mxu0 0.0
    %2427 = vmatpush2.msra.mxu0 0.0
    %2428 = vmatprep.subr.mxu0 0.0
    %2429 = vmatpush2.msra.mxu0 0.0
    %2430 = vmatprep.subr.mxu0 0.0
    %2431 = vmatpush2.msra.mxu0 0.0
    %2432 = vmatprep.subr.mxu0 0.0
    %2433 = vmatpush2.msra.mxu0 0.0
    %2434 = vmatprep.subr.mxu0 0.0
    %2435 = vmatpush2.msra.mxu0 0.0
    %2436 = vmatprep.subr.mxu0 0.0
    %2437 = vmatpush2.msra.mxu0 0.0
    %2438 = vmatprep.subr.mxu0 0.0
    %2439 = vmatpush2.msra.mxu0 0.0
    %2440 = vmatprep.subr.mxu0 0.0
    %2441 = vmatpush2.msra.mxu0 0.0
    %2442 = vmatprep.subr.mxu0 0.0
    %2443 = vmatpush2.msra.mxu0 0.0
    %2444 = vmatprep.subr.mxu0 0.0
    %2445 = vmatpush2.msra.mxu0 0.0
    %2446 = vmatprep.subr.mxu0 0.0
    %2447 = vmatpush2.msra.mxu0 0.0
    %2448 = vmatprep.subr.mxu0 0.0
    %2449 = vmatpush2.msra.mxu0 0.0
    %2450 = vmatprep.subr.mxu0 0.0
    %2451 = vmatpush2.msra.mxu0 0.0
    %2452 = vmatprep.mubr.f32.mxu0 0.0
    %2453 = vmatmul.mubr.f32.gmra.mxu0 %v2386
    %v2454 = vpop.f32.mrf.mxu0
    %v2455 = vadd.f32 %v2171, %v2454
    %v2456 = vpop.f32.mrf.mxu0
    %2457 = vdwg.mxu0
    %2466 = vset.pattern.permute.xlu0 0
    %2467 = vperm.xlu0 %2466, %v2152
    %v2468 = vpop.permute.xlu0 %2467
    %2469 = vset.pattern.permute.xlu0 0
    %2470 = vperm.xlu0 %2469, %v2153
    %v2471 = vpop.permute.xlu0 %2470
    %2472 = vset.pattern.permute.xlu0 0
    %2473 = vperm.xlu0 %2472, %v2154
    %v2474 = vpop.permute.xlu0 %2473
    %2475 = vset.pattern.permute.xlu0 0
    %2476 = vperm.xlu0 %2475, %v2155
    %v2477 = vpop.permute.xlu0 %2476
    %2478 = vset.pattern.permute.xlu0 0
    %2479 = vperm.xlu0 %2478, %v2156
    %v2480 = vpop.permute.xlu0 %2479
    %2481 = vset.pattern.permute.xlu0 0
    %2482 = vperm.xlu0 %2481, %v2157
    %v2483 = vpop.permute.xlu0 %2482
    %2484 = vset.pattern.permute.xlu0 0
    %2485 = vperm.xlu0 %2484, %v2158
    %v2486 = vpop.permute.xlu0 %2485
    %2487 = vset.pattern.permute.xlu0 0
    %2488 = vperm.xlu0 %2487, %v2159
    %v2489 = vpop.permute.xlu0 %2488
    %v2490 = vlaneseq
    %v2491 = vshrl.u32 %v2490, 7
    %v2492 = vsub.s32 %v1227, %v2491
    %v2493 = vrot.slane %v2468, %v2492
    %v2494 = vlaneseq
    %v2495 = vshrl.u32 %v2494, 7
    %v2496 = vsub.s32 %v1227, %v2495
    %v2497 = vrot.slane %v2471, %v2496
    %v2498 = vlaneseq
    %v2499 = vshrl.u32 %v2498, 7
    %v2500 = vsub.s32 %v1227, %v2499
    %v2501 = vrot.slane %v2474, %v2500
    %v2502 = vlaneseq
    %v2503 = vshrl.u32 %v2502, 7
    %v2504 = vsub.s32 %v1227, %v2503
    %v2505 = vrot.slane %v2477, %v2504
    %v2506 = vlaneseq
    %v2507 = vshrl.u32 %v2506, 7
    %v2508 = vsub.s32 %v1227, %v2507
    %v2509 = vrot.slane %v2480, %v2508
    %v2510 = vlaneseq
    %v2511 = vshrl.u32 %v2510, 7
    %v2512 = vsub.s32 %v1227, %v2511
    %v2513 = vrot.slane %v2483, %v2512
    %v2514 = vlaneseq
    %v2515 = vshrl.u32 %v2514, 7
    %v2516 = vsub.s32 %v1227, %v2515
    %v2517 = vrot.slane %v2486, %v2516
    %v2518 = vlaneseq
    %v2519 = vshrl.u32 %v2518, 7
    %v2520 = vsub.s32 %v1227, %v2519
    %v2521 = vrot.slane %v2489, %v2520
    %v2522 = vsel %vm1356, %v2497, %v2493
    %v2523 = vsel %vm1358, %v2501, %v2522
    %v2524 = vsel %vm1360, %v2505, %v2523
    %v2525 = vsel %vm1362, %v2509, %v2524
    %v2526 = vsel %vm1364, %v2513, %v2525
    %v2527 = vsel %vm1366, %v2517, %v2526
    %v2528 = vsel %vm1368, %v2521, %v2527
    %v2529 = vsel %vm1395, %v2528, 0
    %2531 = vmatprep.subr.mxu0 0.0
    %2532 = vmatpush1.msra.mxu0 0.0
    %2533 = vmatprep.subr.mxu0 0.0
    %2534 = vmatpush1.msra.mxu0 0.0
    %2535 = vmatprep.subr.mxu0 0.0
    %2536 = vmatpush1.msra.mxu0 0.0
    %2537 = vmatprep.subr.mxu0 0.0
    %2538 = vmatpush1.msra.mxu0 0.0
    %2539 = vmatprep.subr.mxu0 0.0
    %2540 = vmatpush1.msra.mxu0 0.0
    %2541 = vmatprep.subr.mxu0 0.0
    %2542 = vmatpush1.msra.mxu0 0.0
    %2543 = vmatprep.subr.mxu0 0.0
    %2544 = vmatpush1.msra.mxu0 0.0
    %2545 = vmatprep.subr.mxu0 0.0
    %2546 = vmatpush1.msra.mxu0 0.0
    %2547 = vmatprep.subr.mxu0 0.0
    %2548 = vmatpush1.msra.mxu0 0.0
    %2549 = vmatprep.subr.mxu0 0.0
    %2550 = vmatpush1.msra.mxu0 0.0
    %2551 = vmatprep.subr.mxu0 0.0
    %2552 = vmatpush1.msra.mxu0 0.0
    %2553 = vmatprep.subr.mxu0 0.0
    %2554 = vmatpush1.msra.mxu0 0.0
    %2555 = vmatprep.subr.mxu0 0.0
    %2556 = vmatpush1.msra.mxu0 0.0
    %2557 = vmatprep.subr.mxu0 0.0
    %2558 = vmatpush1.msra.mxu0 0.0
    %2559 = vmatprep.subr.mxu0 0.0
    %2560 = vmatpush1.msra.mxu0 0.0
    %2561 = vmatprep.subr.mxu0 0.0
    %2562 = vmatpush1.msra.mxu0 %v212
    %2563 = vmatprep.subr.mxu0 0.0
    %2564 = vmatpush2.msra.mxu0 0.0
    %2565 = vmatprep.subr.mxu0 0.0
    %2566 = vmatpush2.msra.mxu0 0.0
    %2567 = vmatprep.subr.mxu0 0.0
    %2568 = vmatpush2.msra.mxu0 0.0
    %2569 = vmatprep.subr.mxu0 0.0
    %2570 = vmatpush2.msra.mxu0 0.0
    %2571 = vmatprep.subr.mxu0 0.0
    %2572 = vmatpush2.msra.mxu0 0.0
    %2573 = vmatprep.subr.mxu0 0.0
    %2574 = vmatpush2.msra.mxu0 0.0
    %2575 = vmatprep.subr.mxu0 0.0
    %2576 = vmatpush2.msra.mxu0 0.0
    %2577 = vmatprep.subr.mxu0 0.0
    %2578 = vmatpush2.msra.mxu0 0.0
    %2579 = vmatprep.subr.mxu0 0.0
    %2580 = vmatpush2.msra.mxu0 0.0
    %2581 = vmatprep.subr.mxu0 0.0
    %2582 = vmatpush2.msra.mxu0 0.0
    %2583 = vmatprep.subr.mxu0 0.0
    %2584 = vmatpush2.msra.mxu0 0.0
    %2585 = vmatprep.subr.mxu0 0.0
    %2586 = vmatpush2.msra.mxu0 0.0
    %2587 = vmatprep.subr.mxu0 0.0
    %2588 = vmatpush2.msra.mxu0 0.0
    %2589 = vmatprep.subr.mxu0 0.0
    %2590 = vmatpush2.msra.mxu0 0.0
    %2591 = vmatprep.subr.mxu0 0.0
    %2592 = vmatpush2.msra.mxu0 0.0
    %2593 = vmatprep.subr.mxu0 0.0
    %2594 = vmatpush2.msra.mxu0 0.0
    %2595 = vmatprep.mubr.f32.mxu0 0.0
    %2596 = vmatmul.mubr.f32.gmra.mxu0 %v2529
    %v2597 = vpop.f32.mrf.mxu0
    %v2598 = vadd.f32 %v2171, %v2597
    %v2599 = vpop.f32.mrf.mxu0
    %2600 = vdwg.mxu0
    %2609 = vset.pattern.permute.xlu0 0
    %2610 = vperm.xlu0 %2609, %v2160
    %v2611 = vpop.permute.xlu0 %2610
    %2612 = vset.pattern.permute.xlu0 0
    %2613 = vperm.xlu0 %2612, %v2161
    %v2614 = vpop.permute.xlu0 %2613
    %2615 = vset.pattern.permute.xlu0 0
    %2616 = vperm.xlu0 %2615, %v2162
    %v2617 = vpop.permute.xlu0 %2616
    %2618 = vset.pattern.permute.xlu0 0
    %2619 = vperm.xlu0 %2618, %v2163
    %v2620 = vpop.permute.xlu0 %2619
    %2621 = vset.pattern.permute.xlu0 0
    %2622 = vperm.xlu0 %2621, %v2164
    %v2623 = vpop.permute.xlu0 %2622
    %2624 = vset.pattern.permute.xlu0 0
    %2625 = vperm.xlu0 %2624, %v2165
    %v2626 = vpop.permute.xlu0 %2625
    %2627 = vset.pattern.permute.xlu0 0
    %2628 = vperm.xlu0 %2627, %v2166
    %v2629 = vpop.permute.xlu0 %2628
    %2630 = vset.pattern.permute.xlu0 0
    %2631 = vperm.xlu0 %2630, %v2167
    %v2632 = vpop.permute.xlu0 %2631
    %v2633 = vlaneseq
    %v2634 = vshrl.u32 %v2633, 7
    %v2635 = vsub.s32 %v1227, %v2634
    %v2636 = vrot.slane %v2611, %v2635
    %v2637 = vlaneseq
    %v2638 = vshrl.u32 %v2637, 7
    %v2639 = vsub.s32 %v1227, %v2638
    %v2640 = vrot.slane %v2614, %v2639
    %v2641 = vlaneseq
    %v2642 = vshrl.u32 %v2641, 7
    %v2643 = vsub.s32 %v1227, %v2642
    %v2644 = vrot.slane %v2617, %v2643
    %v2645 = vlaneseq
    %v2646 = vshrl.u32 %v2645, 7
    %v2647 = vsub.s32 %v1227, %v2646
    %v2648 = vrot.slane %v2620, %v2647
    %v2649 = vlaneseq
    %v2650 = vshrl.u32 %v2649, 7
    %v2651 = vsub.s32 %v1227, %v2650
    %v2652 = vrot.slane %v2623, %v2651
    %v2653 = vlaneseq
    %v2654 = vshrl.u32 %v2653, 7
    %v2655 = vsub.s32 %v1227, %v2654
    %v2656 = vrot.slane %v2626, %v2655
    %v2657 = vlaneseq
    %v2658 = vshrl.u32 %v2657, 7
    %v2659 = vsub.s32 %v1227, %v2658
    %v2660 = vrot.slane %v2629, %v2659
    %v2661 = vlaneseq
    %v2662 = vshrl.u32 %v2661, 7
    %v2663 = vsub.s32 %v1227, %v2662
    %v2664 = vrot.slane %v2632, %v2663
    %v2665 = vsel %vm1356, %v2640, %v2636
    %v2666 = vsel %vm1358, %v2644, %v2665
    %v2667 = vsel %vm1360, %v2648, %v2666
    %v2668 = vsel %vm1362, %v2652, %v2667
    %v2669 = vsel %vm1364, %v2656, %v2668
    %v2670 = vsel %vm1366, %v2660, %v2669
    %v2671 = vsel %vm1368, %v2664, %v2670
    %v2672 = vsel %vm1395, %v2671, 0
    %2674 = vmatprep.subr.mxu0 0.0
    %2675 = vmatpush1.msra.mxu0 0.0
    %2676 = vmatprep.subr.mxu0 0.0
    %2677 = vmatpush1.msra.mxu0 0.0
    %2678 = vmatprep.subr.mxu0 0.0
    %2679 = vmatpush1.msra.mxu0 0.0
    %2680 = vmatprep.subr.mxu0 0.0
    %2681 = vmatpush1.msra.mxu0 0.0
    %2682 = vmatprep.subr.mxu0 0.0
    %2683 = vmatpush1.msra.mxu0 0.0
    %2684 = vmatprep.subr.mxu0 0.0
    %2685 = vmatpush1.msra.mxu0 0.0
    %2686 = vmatprep.subr.mxu0 0.0
    %2687 = vmatpush1.msra.mxu0 0.0
    %2688 = vmatprep.subr.mxu0 0.0
    %2689 = vmatpush1.msra.mxu0 0.0
    %2690 = vmatprep.subr.mxu0 0.0
    %2691 = vmatpush1.msra.mxu0 0.0
    %2692 = vmatprep.subr.mxu0 0.0
    %2693 = vmatpush1.msra.mxu0 0.0
    %2694 = vmatprep.subr.mxu0 0.0
    %2695 = vmatpush1.msra.mxu0 0.0
    %2696 = vmatprep.subr.mxu0 0.0
    %2697 = vmatpush1.msra.mxu0 0.0
    %2698 = vmatprep.subr.mxu0 0.0
    %2699 = vmatpush1.msra.mxu0 0.0
    %2700 = vmatprep.subr.mxu0 0.0
    %2701 = vmatpush1.msra.mxu0 0.0
    %2702 = vmatprep.subr.mxu0 0.0
    %2703 = vmatpush1.msra.mxu0 0.0
    %2704 = vmatprep.subr.mxu0 0.0
    %2705 = vmatpush1.msra.mxu0 %v215
    %2706 = vmatprep.subr.mxu0 0.0
    %2707 = vmatpush2.msra.mxu0 0.0
    %2708 = vmatprep.subr.mxu0 0.0
    %2709 = vmatpush2.msra.mxu0 0.0
    %2710 = vmatprep.subr.mxu0 0.0
    %2711 = vmatpush2.msra.mxu0 0.0
    %2712 = vmatprep.subr.mxu0 0.0
    %2713 = vmatpush2.msra.mxu0 0.0
    %2714 = vmatprep.subr.mxu0 0.0
    %2715 = vmatpush2.msra.mxu0 0.0
    %2716 = vmatprep.subr.mxu0 0.0
    %2717 = vmatpush2.msra.mxu0 0.0
    %2718 = vmatprep.subr.mxu0 0.0
    %2719 = vmatpush2.msra.mxu0 0.0
    %2720 = vmatprep.subr.mxu0 0.0
    %2721 = vmatpush2.msra.mxu0 0.0
    %2722 = vmatprep.subr.mxu0 0.0
    %2723 = vmatpush2.msra.mxu0 0.0
    %2724 = vmatprep.subr.mxu0 0.0
    %2725 = vmatpush2.msra.mxu0 0.0
    %2726 = vmatprep.subr.mxu0 0.0
    %2727 = vmatpush2.msra.mxu0 0.0
    %2728 = vmatprep.subr.mxu0 0.0
    %2729 = vmatpush2.msra.mxu0 0.0
    %2730 = vmatprep.subr.mxu0 0.0
    %2731 = vmatpush2.msra.mxu0 0.0
    %2732 = vmatprep.subr.mxu0 0.0
    %2733 = vmatpush2.msra.mxu0 0.0
    %2734 = vmatprep.subr.mxu0 0.0
    %2735 = vmatpush2.msra.mxu0 0.0
    %2736 = vmatprep.subr.mxu0 0.0
    %2737 = vmatpush2.msra.mxu0 0.0
    %2738 = vmatprep.mubr.f32.mxu0 0.0
    %2739 = vmatmul.mubr.f32.gmra.mxu0 %v2672
    %v2740 = vpop.f32.mrf.mxu0
    %v2741 = vadd.f32 %v2171, %v2740
    %v2742 = vpop.f32.mrf.mxu0
    %2743 = vdwg.mxu0
    %v2744 = vrot.slane %v2312, 4
    %v2745 = vadd.f32 %v2312, %v2744
    %v2746 = vrot.slane %v2745, 2
    %v2747 = vadd.f32 %v2745, %v2746
    %v2748 = vrot.slane %v2747, 1
    %v2749 = vadd.f32 %v2747, %v2748
    %v2750 = vrot.slane %v2455, 4
    %v2751 = vadd.f32 %v2455, %v2750
    %v2752 = vrot.slane %v2751, 2
    %v2753 = vadd.f32 %v2751, %v2752
    %v2754 = vrot.slane %v2753, 1
    %v2755 = vadd.f32 %v2753, %v2754
    %v2756 = vrot.slane %v2598, 4
    %v2757 = vadd.f32 %v2598, %v2756
    %v2758 = vrot.slane %v2757, 2
    %v2759 = vadd.f32 %v2757, %v2758
    %v2760 = vrot.slane %v2759, 1
    %v2761 = vadd.f32 %v2759, %v2760
    %v2762 = vrot.slane %v2741, 4
    %v2763 = vadd.f32 %v2741, %v2762
    %v2764 = vrot.slane %v2763, 2
    %v2765 = vadd.f32 %v2763, %v2764
    %v2766 = vrot.slane %v2765, 1
    %v2767 = vadd.f32 %v2765, %v2766
    %v2768 = vrcp.pop 8.0
    %v2769 = vmul.f32 %v2749, %v2768
    %v2770 = vmul.f32 %v2755, %v2768
    %v2771 = vmul.f32 %v2761, %v2768
    %v2772 = vmul.f32 %v2767, %v2768
    %v2773 = vsub.f32 %v2312, %v2769
    %v2774 = vsub.f32 %v2455, %v2770
    %v2775 = vsub.f32 %v2598, %v2771
    %v2776 = vsub.f32 %v2741, %v2772
    %v2777 = vmul.f32 %v2773, %v2773
    %v2778 = vmul.f32 %v2774, %v2774
    %v2779 = vmul.f32 %v2775, %v2775
    %v2780 = vmul.f32 %v2776, %v2776
    %v2781 = vrot.slane %v2777, 4
    %v2782 = vadd.f32 %v2777, %v2781
    %v2783 = vrot.slane %v2782, 2
    %v2784 = vadd.f32 %v2782, %v2783
    %v2785 = vrot.slane %v2784, 1
    %v2786 = vadd.f32 %v2784, %v2785
    %v2787 = vrot.slane %v2778, 4
    %v2788 = vadd.f32 %v2778, %v2787
    %v2789 = vrot.slane %v2788, 2
    %v2790 = vadd.f32 %v2788, %v2789
    %v2791 = vrot.slane %v2790, 1
    %v2792 = vadd.f32 %v2790, %v2791
    %v2793 = vrot.slane %v2779, 4
    %v2794 = vadd.f32 %v2779, %v2793
    %v2795 = vrot.slane %v2794, 2
    %v2796 = vadd.f32 %v2794, %v2795
    %v2797 = vrot.slane %v2796, 1
    %v2798 = vadd.f32 %v2796, %v2797
    %v2799 = vrot.slane %v2780, 4
    %v2800 = vadd.f32 %v2780, %v2799
    %v2801 = vrot.slane %v2800, 2
    %v2802 = vadd.f32 %v2800, %v2801
    %v2803 = vrot.slane %v2802, 1
    %v2804 = vadd.f32 %v2802, %v2803
    %v2805 = vmul.f32 %v2786, %v2768
    %v2806 = vmul.f32 %v2792, %v2768
    %v2807 = vmul.f32 %v2798, %v2768
    %v2808 = vmul.f32 %v2804, %v2768
    %v2809 = vadd.f32 %v2805, 1e-05
    %v2810 = vadd.f32 %v2806, 1e-05
    %v2811 = vadd.f32 %v2807, 1e-05
    %v2812 = vadd.f32 %v2808, 1e-05
    %v2813 = vrsqrt.pop %v2809
    %v2814 = vrsqrt.pop %v2810
    %v2815 = vrsqrt.pop %v2811
    %v2816 = vrsqrt.pop %v2812
    %v2817 = vmul.f32 %v2773, %v2813
    %v2818 = vmul.f32 %v2774, %v2814
    %v2819 = vmul.f32 %v2775, %v2815
    %v2820 = vmul.f32 %v2776, %v2816
    %v2821 = vpack.c.bf16 %v2818, %v2817
    %v2822 = vpack.c.bf16 %v2820, %v2819
    %v2839 = vunpack.c.l.b16 %v75
    %v2840 = vunpack.c.l.b16 %v76
    %v2841 = vunpack.c.l.b16 %v77
    %v2842 = vunpack.c.l.b16 %v78
    %v2843 = vunpack.c.l.b16 %v79
    %v2844 = vunpack.c.l.b16 %v80
    %v2845 = vunpack.c.l.b16 %v81
    %v2846 = vunpack.c.l.b16 %v82
    %v2847 = vunpack.c.l.b16 %v83
    %v2848 = vunpack.c.l.b16 %v84
    %v2849 = vunpack.c.l.b16 %v85
    %v2850 = vunpack.c.l.b16 %v86
    %v2851 = vunpack.c.l.b16 %v87
    %v2852 = vunpack.c.l.b16 %v88
    %v2853 = vunpack.c.l.b16 %v89
    %v2854 = vunpack.c.l.b16 %v90
    %v2855 = vpack.c.b16 %v2840, %v2839
    %v2856 = vpack.c.b16 %v2842, %v2841
    %v2857 = vpack.c.b16 %v2844, %v2843
    %v2858 = vpack.c.b16 %v2846, %v2845
    %v2859 = vpack.c.b16 %v2848, %v2847
    %v2860 = vpack.c.b16 %v2850, %v2849
    %v2861 = vpack.c.b16 %v2852, %v2851
    %v2862 = vpack.c.b16 %v2854, %v2853
    %2871 = vmatprep.subr.bf16.mxu0 0
    %2872 = vmatpush1.bf16.msra.mxu0 %v2862
    %2873 = vmatprep.subr.bf16.mxu0 0
    %2874 = vmatpush1.bf16.msra.mxu0 %v2861
    %2875 = vmatprep.subr.bf16.mxu0 0
    %2876 = vmatpush1.bf16.msra.mxu0 %v2860
    %2877 = vmatprep.subr.bf16.mxu0 0
    %2878 = vmatpush1.bf16.msra.mxu0 %v2859
    %2879 = vmatprep.subr.bf16.mxu0 0
    %2880 = vmatpush1.bf16.msra.mxu0 %v2858
    %2881 = vmatprep.subr.bf16.mxu0 0
    %2882 = vmatpush1.bf16.msra.mxu0 %v2857
    %2883 = vmatprep.subr.bf16.mxu0 0
    %2884 = vmatpush1.bf16.msra.mxu0 %v2856
    %2885 = vmatprep.subr.bf16.mxu0 0
    %2886 = vmatpush1.bf16.msra.mxu0 %v2855
    %2887 = vmatprep.subr.bf16.mxu0 0
    %2888 = vmatpush2.bf16.msra.mxu0 0
    %2889 = vmatprep.subr.bf16.mxu0 0
    %2890 = vmatpush2.bf16.msra.mxu0 0
    %2891 = vmatprep.subr.bf16.mxu0 0
    %2892 = vmatpush2.bf16.msra.mxu0 0
    %2893 = vmatprep.subr.bf16.mxu0 0
    %2894 = vmatpush2.bf16.msra.mxu0 0
    %2895 = vmatprep.subr.bf16.mxu0 0
    %2896 = vmatpush2.bf16.msra.mxu0 0
    %2897 = vmatprep.subr.bf16.mxu0 0
    %2898 = vmatpush2.bf16.msra.mxu0 0
    %2899 = vmatprep.subr.bf16.mxu0 0
    %2900 = vmatpush2.bf16.msra.mxu0 0
    %2901 = vmatprep.subr.bf16.mxu0 0
    %2902 = vmatpush2.bf16.msra.mxu0 0
    %2903 = vmatprep.mubr.bf16.mxu0 0
    %2904 = vmatmul.mubr.bf16.gmra.mxu0 %v2821
    %v2905 = vpop.f32.mrf.mxu0
    %v2906 = vadd.f32 0.0, %v2905
    %v2907 = vpop.f32.mrf.mxu0
    %v2908 = vpop.f32.mrf.mxu0
    %v2909 = vadd.f32 0.0, %v2908
    %v2910 = vpop.f32.mrf.mxu0
    %2911 = vmatprep.mubr.bf16.mxu0 0
    %2912 = vmatmul.mubr.bf16.gmra.mxu0 %v2822
    %v2913 = vpop.f32.mrf.mxu0
    %v2914 = vadd.f32 0.0, %v2913
    %v2915 = vpop.f32.mrf.mxu0
    %v2916 = vpop.f32.mrf.mxu0
    %v2917 = vadd.f32 0.0, %v2916
    %v2918 = vpop.f32.mrf.mxu0
    %2919 = vdwg.mxu0
    %v2920 = vmax.f32 %v2906, 0.0
    %v2921 = vmax.f32 %v2909, 0.0
    %v2922 = vmax.f32 %v2914, 0.0
    %v2923 = vmax.f32 %v2917, 0.0
    %v2924 = vrot.slane %v2920, 4
    %v2925 = vadd.f32 %v2920, %v2924
    %v2926 = vrot.slane %v2925, 2
    %v2927 = vadd.f32 %v2925, %v2926
    %v2928 = vrot.slane %v2927, 1
    %v2929 = vadd.f32 %v2927, %v2928
    %v2930 = vrot.slane %v2921, 4
    %v2931 = vadd.f32 %v2921, %v2930
    %v2932 = vrot.slane %v2931, 2
    %v2933 = vadd.f32 %v2931, %v2932
    %v2934 = vrot.slane %v2933, 1
    %v2935 = vadd.f32 %v2933, %v2934
    %v2936 = vrot.slane %v2922, 4
    %v2937 = vadd.f32 %v2922, %v2936
    %v2938 = vrot.slane %v2937, 2
    %v2939 = vadd.f32 %v2937, %v2938
    %v2940 = vrot.slane %v2939, 1
    %v2941 = vadd.f32 %v2939, %v2940
    %v2942 = vrot.slane %v2923, 4
    %v2943 = vadd.f32 %v2923, %v2942
    %v2944 = vrot.slane %v2943, 2
    %v2945 = vadd.f32 %v2943, %v2944
    %v2946 = vrot.slane %v2945, 1
    %v2947 = vadd.f32 %v2945, %v2946
    %v2948 = vmul.f32 %v2929, %v2768
    %v2949 = vmul.f32 %v2935, %v2768
    %v2950 = vmul.f32 %v2941, %v2768
    %v2951 = vmul.f32 %v2947, %v2768
    %v2952 = vsub.f32 %v2920, %v2948
    %v2953 = vsub.f32 %v2921, %v2949
    %v2954 = vsub.f32 %v2922, %v2950
    %v2955 = vsub.f32 %v2923, %v2951
    %v2956 = vmul.f32 %v2952, %v2952
    %v2957 = vmul.f32 %v2953, %v2953
    %v2958 = vmul.f32 %v2954, %v2954
    %v2959 = vmul.f32 %v2955, %v2955
    %v2960 = vrot.slane %v2956, 4
    %v2961 = vadd.f32 %v2956, %v2960
    %v2962 = vrot.slane %v2961, 2
    %v2963 = vadd.f32 %v2961, %v2962
    %v2964 = vrot.slane %v2963, 1
    %v2965 = vadd.f32 %v2963, %v2964
    %v2966 = vrot.slane %v2957, 4
    %v2967 = vadd.f32 %v2957, %v2966
    %v2968 = vrot.slane %v2967, 2
    %v2969 = vadd.f32 %v2967, %v2968
    %v2970 = vrot.slane %v2969, 1
    %v2971 = vadd.f32 %v2969, %v2970
    %v2972 = vrot.slane %v2958, 4
    %v2973 = vadd.f32 %v2958, %v2972
    %v2974 = vrot.slane %v2973, 2
    %v2975 = vadd.f32 %v2973, %v2974
    %v2976 = vrot.slane %v2975, 1
    %v2977 = vadd.f32 %v2975, %v2976
    %v2978 = vrot.slane %v2959, 4
    %v2979 = vadd.f32 %v2959, %v2978
    %v2980 = vrot.slane %v2979, 2
    %v2981 = vadd.f32 %v2979, %v2980
    %v2982 = vrot.slane %v2981, 1
    %v2983 = vadd.f32 %v2981, %v2982
    %v2984 = vmul.f32 %v2965, %v2768
    %v2985 = vmul.f32 %v2971, %v2768
    %v2986 = vmul.f32 %v2977, %v2768
    %v2987 = vmul.f32 %v2983, %v2768
    %v2988 = vadd.f32 %v2984, 1e-05
    %v2989 = vadd.f32 %v2985, 1e-05
    %v2990 = vadd.f32 %v2986, 1e-05
    %v2991 = vadd.f32 %v2987, 1e-05
    %v2992 = vrsqrt.pop %v2988
    %v2993 = vrsqrt.pop %v2989
    %v2994 = vrsqrt.pop %v2990
    %v2995 = vrsqrt.pop %v2991
    %v2996 = vmul.f32 %v2952, %v2992
    %v2997 = vmul.f32 %v2953, %v2993
    %v2998 = vmul.f32 %v2954, %v2994
    %v2999 = vmul.f32 %v2955, %v2995
    %v3000 = vpack.c.bf16 %v2997, %v2996
    %v3001 = vpack.c.bf16 %v2999, %v2998
    %v3018 = vunpack.c.l.b16 %v91
    %v3019 = vunpack.c.l.b16 %v92
    %v3020 = vunpack.c.l.b16 %v93
    %v3021 = vunpack.c.l.b16 %v94
    %v3022 = vunpack.c.l.b16 %v95
    %v3023 = vunpack.c.l.b16 %v96
    %v3024 = vunpack.c.l.b16 %v97
    %v3025 = vunpack.c.l.b16 %v98
    %v3026 = vunpack.c.l.b16 %v99
    %v3027 = vunpack.c.l.b16 %v100
    %v3028 = vunpack.c.l.b16 %v101
    %v3029 = vunpack.c.l.b16 %v102
    %v3030 = vunpack.c.l.b16 %v103
    %v3031 = vunpack.c.l.b16 %v104
    %v3032 = vunpack.c.l.b16 %v105
    %v3033 = vunpack.c.l.b16 %v106
    %v3034 = vpack.c.b16 %v3019, %v3018
    %v3035 = vpack.c.b16 %v3021, %v3020
    %v3036 = vpack.c.b16 %v3023, %v3022
    %v3037 = vpack.c.b16 %v3025, %v3024
    %v3038 = vpack.c.b16 %v3027, %v3026
    %v3039 = vpack.c.b16 %v3029, %v3028
    %v3040 = vpack.c.b16 %v3031, %v3030
    %v3041 = vpack.c.b16 %v3033, %v3032
    %3050 = vmatprep.subr.bf16.mxu0 0
    %3051 = vmatpush1.bf16.msra.mxu0 %v3041
    %3052 = vmatprep.subr.bf16.mxu0 0
    %3053 = vmatpush1.bf16.msra.mxu0 %v3040
    %3054 = vmatprep.subr.bf16.mxu0 0
    %3055 = vmatpush1.bf16.msra.mxu0 %v3039
    %3056 = vmatprep.subr.bf16.mxu0 0
    %3057 = vmatpush1.bf16.msra.mxu0 %v3038
    %3058 = vmatprep.subr.bf16.mxu0 0
    %3059 = vmatpush1.bf16.msra.mxu0 %v3037
    %3060 = vmatprep.subr.bf16.mxu0 0
    %3061 = vmatpush1.bf16.msra.mxu0 %v3036
    %3062 = vmatprep.subr.bf16.mxu0 0
    %3063 = vmatpush1.bf16.msra.mxu0 %v3035
    %3064 = vmatprep.subr.bf16.mxu0 0
    %3065 = vmatpush1.bf16.msra.mxu0 %v3034
    %3066 = vmatprep.subr.bf16.mxu0 0
    %3067 = vmatpush2.bf16.msra.mxu0 0
    %3068 = vmatprep.subr.bf16.mxu0 0
    %3069 = vmatpush2.bf16.msra.mxu0 0
    %3070 = vmatprep.subr.bf16.mxu0 0
    %3071 = vmatpush2.bf16.msra.mxu0 0
    %3072 = vmatprep.subr.bf16.mxu0 0
    %3073 = vmatpush2.bf16.msra.mxu0 0
    %3074 = vmatprep.subr.bf16.mxu0 0
    %3075 = vmatpush2.bf16.msra.mxu0 0
    %3076 = vmatprep.subr.bf16.mxu0 0
    %3077 = vmatpush2.bf16.msra.mxu0 0
    %3078 = vmatprep.subr.bf16.mxu0 0
    %3079 = vmatpush2.bf16.msra.mxu0 0
    %3080 = vmatprep.subr.bf16.mxu0 0
    %3081 = vmatpush2.bf16.msra.mxu0 0
    %3082 = vmatprep.mubr.bf16.mxu0 0
    %3083 = vmatmul.mubr.bf16.gmra.mxu0 %v3000
    %v3084 = vpop.f32.mrf.mxu0
    %v3085 = vadd.f32 0.0, %v3084
    %v3086 = vpop.f32.mrf.mxu0
    %v3087 = vpop.f32.mrf.mxu0
    %v3088 = vadd.f32 0.0, %v3087
    %v3089 = vpop.f32.mrf.mxu0
    %3090 = vmatprep.mubr.bf16.mxu0 0
    %3091 = vmatmul.mubr.bf16.gmra.mxu0 %v3001
    %v3092 = vpop.f32.mrf.mxu0
    %v3093 = vadd.f32 0.0, %v3092
    %v3094 = vpop.f32.mrf.mxu0
    %v3095 = vpop.f32.mrf.mxu0
    %v3096 = vadd.f32 0.0, %v3095
    %v3097 = vpop.f32.mrf.mxu0
    %3098 = vdwg.mxu0
    %v3099 = vmax.f32 %v3085, 0.0
    %v3100 = vmax.f32 %v3088, 0.0
    %v3101 = vmax.f32 %v3093, 0.0
    %v3102 = vmax.f32 %v3096, 0.0
    %v3103 = vrot.slane %v3099, 4
    %v3104 = vadd.f32 %v3099, %v3103
    %v3105 = vrot.slane %v3104, 2
    %v3106 = vadd.f32 %v3104, %v3105
    %v3107 = vrot.slane %v3106, 1
    %v3108 = vadd.f32 %v3106, %v3107
    %v3109 = vrot.slane %v3100, 4
    %v3110 = vadd.f32 %v3100, %v3109
    %v3111 = vrot.slane %v3110, 2
    %v3112 = vadd.f32 %v3110, %v3111
    %v3113 = vrot.slane %v3112, 1
    %v3114 = vadd.f32 %v3112, %v3113
    %v3115 = vrot.slane %v3101, 4
    %v3116 = vadd.f32 %v3101, %v3115
    %v3117 = vrot.slane %v3116, 2
    %v3118 = vadd.f32 %v3116, %v3117
    %v3119 = vrot.slane %v3118, 1
    %v3120 = vadd.f32 %v3118, %v3119
    %v3121 = vrot.slane %v3102, 4
    %v3122 = vadd.f32 %v3102, %v3121
    %v3123 = vrot.slane %v3122, 2
    %v3124 = vadd.f32 %v3122, %v3123
    %v3125 = vrot.slane %v3124, 1
    %v3126 = vadd.f32 %v3124, %v3125
    %v3127 = vmul.f32 %v3108, %v2768
    %v3128 = vmul.f32 %v3114, %v2768
    %v3129 = vmul.f32 %v3120, %v2768
    %v3130 = vmul.f32 %v3126, %v2768
    %v3131 = vsub.f32 %v3099, %v3127
    %v3132 = vsub.f32 %v3100, %v3128
    %v3133 = vsub.f32 %v3101, %v3129
    %v3134 = vsub.f32 %v3102, %v3130
    %v3135 = vmul.f32 %v3131, %v3131
    %v3136 = vmul.f32 %v3132, %v3132
    %v3137 = vmul.f32 %v3133, %v3133
    %v3138 = vmul.f32 %v3134, %v3134
    %v3139 = vrot.slane %v3135, 4
    %v3140 = vadd.f32 %v3135, %v3139
    %v3141 = vrot.slane %v3140, 2
    %v3142 = vadd.f32 %v3140, %v3141
    %v3143 = vrot.slane %v3142, 1
    %v3144 = vadd.f32 %v3142, %v3143
    %v3145 = vrot.slane %v3136, 4
    %v3146 = vadd.f32 %v3136, %v3145
    %v3147 = vrot.slane %v3146, 2
    %v3148 = vadd.f32 %v3146, %v3147
    %v3149 = vrot.slane %v3148, 1
    %v3150 = vadd.f32 %v3148, %v3149
    %v3151 = vrot.slane %v3137, 4
    %v3152 = vadd.f32 %v3137, %v3151
    %v3153 = vrot.slane %v3152, 2
    %v3154 = vadd.f32 %v3152, %v3153
    %v3155 = vrot.slane %v3154, 1
    %v3156 = vadd.f32 %v3154, %v3155
    %v3157 = vrot.slane %v3138, 4
    %v3158 = vadd.f32 %v3138, %v3157
    %v3159 = vrot.slane %v3158, 2
    %v3160 = vadd.f32 %v3158, %v3159
    %v3161 = vrot.slane %v3160, 1
    %v3162 = vadd.f32 %v3160, %v3161
    %v3163 = vmul.f32 %v3144, %v2768
    %v3164 = vmul.f32 %v3150, %v2768
    %v3165 = vmul.f32 %v3156, %v2768
    %v3166 = vmul.f32 %v3162, %v2768
    %v3167 = vadd.f32 %v3163, 1e-05
    %v3168 = vadd.f32 %v3164, 1e-05
    %v3169 = vadd.f32 %v3165, 1e-05
    %v3170 = vadd.f32 %v3166, 1e-05
    %v3171 = vrsqrt.pop %v3167
    %v3172 = vrsqrt.pop %v3168
    %v3173 = vrsqrt.pop %v3169
    %v3174 = vrsqrt.pop %v3170
    %v3175 = vmul.f32 %v3131, %v3171
    %v3176 = vmul.f32 %v3132, %v3172
    %v3177 = vmul.f32 %v3133, %v3173
    %v3178 = vmul.f32 %v3134, %v3174
    %v3179 = vpack.c.bf16 %v3176, %v3175
    %v3180 = vpack.c.bf16 %v3178, %v3177
    %3181 = vmatprep.subr.bf16.mxu0 0
    %3182 = vmatpush1.bf16.msra.mxu0 %v3041
    %3183 = vmatprep.subr.bf16.mxu0 0
    %3184 = vmatpush1.bf16.msra.mxu0 %v3040
    %3185 = vmatprep.subr.bf16.mxu0 0
    %3186 = vmatpush1.bf16.msra.mxu0 %v3039
    %3187 = vmatprep.subr.bf16.mxu0 0
    %3188 = vmatpush1.bf16.msra.mxu0 %v3038
    %3189 = vmatprep.subr.bf16.mxu0 0
    %3190 = vmatpush1.bf16.msra.mxu0 %v3037
    %3191 = vmatprep.subr.bf16.mxu0 0
    %3192 = vmatpush1.bf16.msra.mxu0 %v3036
    %3193 = vmatprep.subr.bf16.mxu0 0
    %3194 = vmatpush1.bf16.msra.mxu0 %v3035
    %3195 = vmatprep.subr.bf16.mxu0 0
    %3196 = vmatpush1.bf16.msra.mxu0 %v3034
    %3197 = vmatprep.subr.bf16.mxu0 0
    %3198 = vmatpush2.bf16.msra.mxu0 0
    %3199 = vmatprep.subr.bf16.mxu0 0
    %3200 = vmatpush2.bf16.msra.mxu0 0
    %3201 = vmatprep.subr.bf16.mxu0 0
    %3202 = vmatpush2.bf16.msra.mxu0 0
    %3203 = vmatprep.subr.bf16.mxu0 0
    %3204 = vmatpush2.bf16.msra.mxu0 0
    %3205 = vmatprep.subr.bf16.mxu0 0
    %3206 = vmatpush2.bf16.msra.mxu0 0
    %3207 = vmatprep.subr.bf16.mxu0 0
    %3208 = vmatpush2.bf16.msra.mxu0 0
    %3209 = vmatprep.subr.bf16.mxu0 0
    %3210 = vmatpush2.bf16.msra.mxu0 0
    %3211 = vmatprep.subr.bf16.mxu0 0
    %3212 = vmatpush2.bf16.msra.mxu0 0
    %3213 = vmatprep.mubr.bf16.mxu0 0
    %3214 = vmatmul.mubr.bf16.gmra.mxu0 %v3179
    %v3215 = vpop.f32.mrf.mxu0
    %v3216 = vadd.f32 0.0, %v3215
    %v3217 = vpop.f32.mrf.mxu0
    %v3218 = vpop.f32.mrf.mxu0
    %v3219 = vadd.f32 0.0, %v3218
    %v3220 = vpop.f32.mrf.mxu0
    %3221 = vmatprep.mubr.bf16.mxu0 0
    %3222 = vmatmul.mubr.bf16.gmra.mxu0 %v3180
    %v3223 = vpop.f32.mrf.mxu0
    %v3224 = vadd.f32 0.0, %v3223
    %v3225 = vpop.f32.mrf.mxu0
    %v3226 = vpop.f32.mrf.mxu0
    %v3227 = vadd.f32 0.0, %v3226
    %v3228 = vpop.f32.mrf.mxu0
    %3229 = vdwg.mxu0
    %v3230 = vmax.f32 %v3216, 0.0
    %v3231 = vmax.f32 %v3219, 0.0
    %v3232 = vmax.f32 %v3224, 0.0
    %v3233 = vmax.f32 %v3227, 0.0
    %v3234 = vxor.u32 %v3230, 2147483648
    %v3235 = vxor.u32 %v3231, 2147483648
    %v3236 = vxor.u32 %v3232, 2147483648
    %v3237 = vxor.u32 %v3233, 2147483648
    %v3238 = vmul.f32 %v3234, 1.442695
    %v3239 = vpow.pop %v3238
    %v3240 = vmul.f32 %v3235, 1.442695
    %v3241 = vpow.pop %v3240
    %v3242 = vmul.f32 %v3236, 1.442695
    %v3243 = vpow.pop %v3242
    %v3244 = vmul.f32 %v3237, 1.442695
    %v3245 = vpow.pop %v3244
    %v3246 = vadd.f32 %v3239, 1.0
    %v3247 = vadd.f32 %v3241, 1.0
    %v3248 = vadd.f32 %v3243, 1.0
    %v3249 = vadd.f32 %v3245, 1.0
    %v3250 = vrcp.pop %v3246
    %v3251 = vmul.f32 1.0, %v3250
    %v3252 = vrcp.pop %v3247
    %v3253 = vmul.f32 1.0, %v3252
    %v3254 = vrcp.pop %v3248
    %v3255 = vmul.f32 1.0, %v3254
    %v3256 = vrcp.pop %v3249
    %v3257 = vmul.f32 1.0, %v3256
    %3258 = vst [vmem:[#allocation8] sm:$0xff] %v3251
    %3259 = vst [vmem:[#allocation8 + $0x8] sm:$0xff] %v3253
    %3260 = vst [vmem:[#allocation8 + $0x10] sm:$0xff] %v3255
    %3261 = vst [vmem:[#allocation8 + $0x18] sm:$0xff] %v3257
    // Predicated region
    $region26: #{tpu_custom_call.1} parent=1 // pred_check
      _
    $region27: #{tpu_custom_call.1} parent=1 // pred_check_branch
      %3263 = sbr.rel (0) target = $region29
    $region28: #{tpu_custom_call.1} parent=1 // pred_region
      %s3265 = ssub.s32 512, 512
      %3266 = vsyncadd [#allocation4], %s3265
      %s3267 = sshll.u32 [#allocation8], 4
      %s3268 = int_to_ptr.vmem [resolvable:$true] %s3267
      %3273 = dma.vmem_to_hbm [thread:$0]  %s3268, 512, %s3, [#allocation4], 128, 128, 8
    $region29: #{tpu_custom_call.1} parent=1 // pred_fallthru
      _
    // Predicated region
    $region30: #{tpu_custom_call.1} parent=1 // pred_check
      _
    $region31: #{tpu_custom_call.1} parent=1 // pred_check_branch
      %3275 = sbr.rel (0) target = $region33
    $region32: #{tpu_custom_call.1} parent=1 // pred_region
      %3276 = dma.done [#allocation4], 512
    $region33: #{tpu_custom_call.1} parent=1 // pred_fallthru
      _
    %3277 = vsyncpa [#allocation3], 1
    %3278 = vsyncpa [#allocation6], 1
    %3279 = vsyncpa [#allocation4], 1

</llo_original>
